<compile_context>
chip_gen: v7x
topology: tpu7x:2x2x1
jax: 0.10.0
libtpu: 0.0.40
codegen_flags: <defaults>
</compile_context>

<pallas_src>
import functools

import jax
import jax.numpy as jnp
from jax.experimental import pallas as pl
from jax.experimental.pallas import tpu as pltpu


_VMEM_LIMIT = 32 * 1024 * 1024  # explicit scoped-VMEM budget, safe on v5e/v6e/v7x


def _round_up(x, m):
    return ((x + m - 1) // m) * m


def _sigmoid(x):
    # hand-rolled logistic (exp + reciprocal) -> clean EUP lowering in-kernel
    return 1.0 / (1.0 + jnp.exp(-x))


# ---------------------------------------------------------------------------
# Fused MLP: the whole Linear->ReLU stack inside one kernel.
# ---------------------------------------------------------------------------
def _fused_mlp_kernel(*refs, num_layers):
    x_ref, out_ref = refs[0], refs[-1]
    h = x_ref[...].astype(jnp.float32)
    for l in range(num_layers):
        w_ref = refs[1 + 2 * l]          # (IN_p, OUT_p), f32 or bf16
        b_ref = refs[2 + 2 * l]          # (1, OUT_p), f32
        y = jnp.dot(h.astype(w_ref.dtype), w_ref[...],
                    preferred_element_type=jnp.float32)
        h = jnp.maximum(y + b_ref[...], 0.0)          # bias + ReLU epilogue in f32
    out_ref[...] = h.astype(out_ref.dtype)


def fused_mlp(x_p, layers, *, tm_max=256):
    """x_p: (M, IN_p) f32 with M % 8 == 0, IN_p % 128 == 0 (already padded).
    layers: list of (w_p, b_p) padded & pre-transposed.  Returns (M, OUT_p) f32."""
    M, in_p = x_p.shape
    assert M % 8 == 0 and in_p % 128 == 0, (M, in_p)
    tm = M if M <= tm_max else tm_max
    m_pad = _round_up(M, tm)
    if m_pad != M:
        x_p = jnp.pad(x_p, ((0, m_pad - M), (0, 0)))
    out_p = layers[-1][0].shape[1]
    n_layers = len(layers)

    # TODO(synk): add K/N tiling with an f32 accumulator for very wide layers;
    # for this model's layer widths, fully-resident weights per row-tile are optimal.
    operands = [x_p]
    in_specs = [pl.BlockSpec((tm, in_p), lambda i: (i, 0))]
    flops = 0
    bytes_acc = x_p.size * x_p.dtype.itemsize + m_pad * out_p * 4
    for w_p, b_p in layers:
        operands += [w_p, b_p]
        in_specs += [pl.BlockSpec(w_p.shape, lambda i: (0, 0)),
                     pl.BlockSpec(b_p.shape, lambda i: (0, 0))]
        flops += 2 * m_pad * w_p.shape[0] * w_p.shape[1]
        bytes_acc += w_p.size * w_p.dtype.itemsize + b_p.size * b_p.dtype.itemsize

    out = pl.pallas_call(
        functools.partial(_fused_mlp_kernel, num_layers=n_layers),
        out_shape=jax.ShapeDtypeStruct((m_pad, out_p), jnp.float32),
        grid_spec=pltpu.PrefetchScalarGridSpec(
            num_scalar_prefetch=0,
            grid=(m_pad // tm,),
            in_specs=in_specs,
            out_specs=pl.BlockSpec((tm, out_p), lambda i: (i, 0)),
        ),
        compiler_params=pltpu.CompilerParams(
            dimension_semantics=("parallel",),       # shards rows across TCs on v7x
            vmem_limit_bytes=_VMEM_LIMIT,
        ),
        cost_estimate=pl.CostEstimate(
            flops=flops, transcendentals=0, bytes_accessed=bytes_acc),
    )(*operands)
    return out[:M] if m_pad != M else out


# ---------------------------------------------------------------------------
# One LSTM layer: sequential grid over time, h/c persist in VMEM scratch.
# ---------------------------------------------------------------------------
def _lstm_layer_kernel(x_ref, wih_ref, whh_ref, b_ref, out_ref, h_scr, c_scr):
    t = pl.program_id(0)

    @pl.when(t == 0)
    def _():
        h_scr[...] = jnp.zeros_like(h_scr)
        c_scr[...] = jnp.zeros_like(c_scr)

    h_p = h_scr.shape[-1]
    x_t = x_ref[0]                                        # (B_p, IN_p)
    gates = (jnp.dot(x_t, wih_ref[...], preferred_element_type=jnp.float32)
             + jnp.dot(h_scr[...], whh_ref[...], preferred_element_type=jnp.float32)
             + b_ref[...])                                # (B_p, 4*H_p) gate order i|f|g|o
    i_g = _sigmoid(gates[:, 0 * h_p:1 * h_p])
    f_g = _sigmoid(gates[:, 1 * h_p:2 * h_p])
    g_g = jnp.tanh(gates[:, 2 * h_p:3 * h_p])
    o_g = _sigmoid(gates[:, 3 * h_p:4 * h_p])
    c_new = f_g * c_scr[...] + i_g * g_g
    h_new = o_g * jnp.tanh(c_new)
    c_scr[...] = c_new
    h_scr[...] = h_new
    out_ref[0] = h_new.astype(out_ref.dtype)


def lstm_layer(x_seq, wih_p, whh_p, b_p):
    """x_seq: (L, B_p, IN_p) f32, padded.  Returns all hidden states (L, B_p, H_p)."""
    L, b_pad, in_p = x_seq.shape
    h_p = whh_p.shape[0]

    flops = 2 * L * b_pad * (in_p + h_p) * 4 * h_p
    transcend = 5 * L * b_pad * h_p
    bytes_acc = 4 * (x_seq.size + wih_p.size + whh_p.size + b_p.size + L * b_pad * h_p)

    return pl.pallas_call(
        _lstm_layer_kernel,
        out_shape=jax.ShapeDtypeStruct((L, b_pad, h_p), jnp.float32),
        grid_spec=pltpu.PrefetchScalarGridSpec(
            num_scalar_prefetch=0,
            grid=(L,),                                    # sequential recurrence
            in_specs=[
                pl.BlockSpec((1, b_pad, in_p), lambda t: (t, 0, 0)),
                pl.BlockSpec((in_p, 4 * h_p), lambda t: (0, 0)),
                pl.BlockSpec((h_p, 4 * h_p), lambda t: (0, 0)),
                pl.BlockSpec((1, 4 * h_p), lambda t: (0, 0)),
            ],
            out_specs=pl.BlockSpec((1, b_pad, h_p), lambda t: (t, 0, 0)),
            scratch_shapes=[pltpu.VMEM((b_pad, h_p), jnp.float32),
                            pltpu.VMEM((b_pad, h_p), jnp.float32)],
        ),
        compiler_params=pltpu.CompilerParams(
            dimension_semantics=("arbitrary",),
            vmem_limit_bytes=_VMEM_LIMIT,
        ),
        cost_estimate=pl.CostEstimate(
            flops=flops, transcendentals=transcend, bytes_accessed=bytes_acc),
    )(x_seq, wih_p, whh_p, b_p)


# ---------------------------------------------------------------------------
# Parameter init (PyTorch-style uniform) and one-time padding/preprocessing.
# ---------------------------------------------------------------------------
def init_mlp_params(key, input_size, output_size, hidden_size):
    sizes = [input_size] + list(hidden_size) + [output_size]
    params = []
    for i in range(len(sizes) - 1):
        fan_in, fan_out = sizes[i], sizes[i + 1]
        key, kw, kb = jax.random.split(key, 3)
        bound = 1.0 / (fan_in ** 0.5)
        w_t = jax.random.uniform(kw, (fan_in, fan_out), jnp.float32, -bound, bound)
        b = jax.random.uniform(kb, (fan_out,), jnp.float32, -bound, bound)
        params.append((w_t, b))
    return params


def init_lstm_params(key, input_size, hidden_size, num_layers):
    layers = []
    bound = 1.0 / (hidden_size ** 0.5)
    for layer in range(num_layers):
        in_sz = input_size if layer == 0 else hidden_size
        key, k1, k2, k3, k4 = jax.random.split(key, 5)
        w_ih_t = jax.random.uniform(k1, (in_sz, 4 * hidden_size), jnp.float32, -bound, bound)
        w_hh_t = jax.random.uniform(k2, (hidden_size, 4 * hidden_size), jnp.float32, -bound, bound)
        b_ih = jax.random.uniform(k3, (4 * hidden_size,), jnp.float32, -bound, bound)
        b_hh = jax.random.uniform(k4, (4 * hidden_size,), jnp.float32, -bound, bound)
        layers.append((w_ih_t, w_hh_t, b_ih + b_hh))      # combined bias (same math)
    return layers


def _pad_linear(w_t, b, mxu_dtype):
    fan_in, fan_out = w_t.shape
    in_p, out_p = _round_up(fan_in, 128), _round_up(fan_out, 128)
    w_p = jnp.zeros((in_p, out_p), mxu_dtype).at[:fan_in, :fan_out].set(w_t.astype(mxu_dtype))
    b_p = jnp.zeros((1, out_p), jnp.float32).at[0, :fan_out].set(b)
    return w_p, b_p


def _pad_lstm_layer(w_ih_t, w_hh_t, b):
    in_sz = w_ih_t.shape[0]
    h = w_hh_t.shape[0]
    in_p, h_p = _round_up(in_sz, 128), _round_up(h, 128)
    w_ih_p = jnp.zeros((in_p, 4 * h_p), jnp.float32)
    w_hh_p = jnp.zeros((h_p, 4 * h_p), jnp.float32)
    b_p = jnp.zeros((1, 4 * h_p), jnp.float32)
    for k in range(4):   # re-lay gate blocks i|f|g|o at H_p (lane-aligned) stride
        w_ih_p = w_ih_p.at[:in_sz, k * h_p:k * h_p + h].set(w_ih_t[:, k * h:(k + 1) * h])
        w_hh_p = w_hh_p.at[:h, k * h_p:k * h_p + h].set(w_hh_t[:, k * h:(k + 1) * h])
        b_p = b_p.at[0, k * h_p:k * h_p + h].set(b[k * h:(k + 1) * h])
    return w_ih_p, w_hh_p, b_p


def prepare_params(raw, *, use_bf16_mxu=False):
    """One-time preprocessing: pre-transposed weights are zero-padded to
    (8,128)-aligned / lane-dense shapes; MLP weights optionally cast to bf16
    (f32 accumulation in-kernel).  Done once, outside the forward pass."""
    mxu_dtype = jnp.bfloat16 if use_bf16_mxu else jnp.float32
    return {
        "mlp1": [_pad_linear(w, b, mxu_dtype) for (w, b) in raw["mlp1"]],
        "lstm": [_pad_lstm_layer(*lay) for lay in raw["lstm"]],
        "mlp2": [_pad_linear(w, b, mxu_dtype) for (w, b) in raw["mlp2"]],
    }


# ---------------------------------------------------------------------------
# Full RluModel forward:  MLP1 -> stacked LSTM -> MLP2
# ---------------------------------------------------------------------------
def rlu_forward(sq_in, prepared):
    """sq_in: (L, N, input_size)  ->  (L, N, 1), matching RluModel.forward."""
    L, N, f = sq_in.shape
    b_pad = _round_up(N, 8)
    f_pad = prepared["mlp1"][0][0].shape[0]

    x = jnp.zeros((L, b_pad, f_pad), jnp.float32).at[:, :N, :f].set(
        sq_in.astype(jnp.float32))

    # MLP 1 over all (time, batch) rows at once — ONE fused kernel call.
    h = fused_mlp(x.reshape(L * b_pad, f_pad), prepared["mlp1"])
    h = h.reshape(L, b_pad, -1)

    # Stacked LSTM — one kernel call per layer, h/c carried in VMEM scratch.
    for (w_ih_p, w_hh_p, bias_p) in prepared["lstm"]:
        h = lstm_layer(h, w_ih_p, w_hh_p, bias_p)

    # MLP 2 over all rows at once — ONE fused kernel call.
    h_p = h.shape[-1]
    y = fused_mlp(h.reshape(L * b_pad, h_p), prepared["mlp2"])
    return y.reshape(L, b_pad, -1)[:, :N, :1]


# ---------------------------------------------------------------------------
# Pure-JAX reference (unpadded), matching PyTorch semantics.
# ---------------------------------------------------------------------------
def _mlp_ref(x, layers):
    h = x
    for w_t, b in layers:
        h = jnp.maximum(
            jnp.dot(h, w_t, precision=jax.lax.Precision.HIGHEST) + b, 0.0)
    return h


def _lstm_ref(x_seq, layers):
    h_seq = x_seq
    for (w_ih_t, w_hh_t, b) in layers:
        n = h_seq.shape[1]
        hidden = w_hh_t.shape[0]

        def step(carry, x_t, w_ih_t=w_ih_t, w_hh_t=w_hh_t, b=b):
            h, c = carry
            gates = (jnp.dot(x_t, w_ih_t, precision=jax.lax.Precision.HIGHEST)
                     + jnp.dot(h, w_hh_t, precision=jax.lax.Precision.HIGHEST) + b)
            i_g, f_g, g_g, o_g = jnp.split(gates, 4, axis=-1)
            i_g, f_g, o_g = _sigmoid(i_g), _sigmoid(f_g), _sigmoid(o_g)
            g_g = jnp.tanh(g_g)
            c = f_g * c + i_g * g_g
            h = o_g * jnp.tanh(c)
            return (h, c), h

        init = (jnp.zeros((n, hidden), jnp.float32),
                jnp.zeros((n, hidden), jnp.float32))
        _, h_seq = jax.lax.scan(step, init, h_seq)
    return h_seq


def rlu_forward_ref(sq_in, raw):
    h = _mlp_ref(sq_in, raw["mlp1"])
    h = _lstm_ref(h, raw["lstm"])
    return _mlp_ref(h, raw["mlp2"])


if __name__ == "__main__":
    key = jax.random.PRNGKey(0)
    k_in, k1, k2, k3 = jax.random.split(key, 4)

    # RluModel(input_size=16, output_size_1=24, hidden_size_1=[32, 32],
    #          hidden_size_2=[32], hidden_size_lstm=32, num_layers_lstm=2)
    seq_len, batch = 8, 2
    input_size = 16
    output_size_1 = 24
    hidden_size_1 = [32, 32]
    hidden_size_2 = [32]
    hidden_size_lstm = 32
    num_layers_lstm = 2

    sq_in = jax.random.normal(k_in, (seq_len, batch, input_size), jnp.float32)

    raw = {
        "mlp1": init_mlp_params(k1, input_size, output_size_1, hidden_size_1),
        "lstm": init_lstm_params(k2, output_size_1, hidden_size_lstm, num_layers_lstm),
        "mlp2": init_mlp_params(k3, hidden_size_lstm, 1, hidden_size_2),
    }

    ref = rlu_forward_ref(sq_in, raw)
    fwd = jax.jit(rlu_forward)

    # f32 path (strict numerics; v5e-friendly).
    out = jax.block_until_ready(fwd(sq_in, prepare_params(raw, use_bf16_mxu=False)))
    assert out.shape == (seq_len, batch, 1), out.shape
    assert jnp.allclose(out, ref, atol=2e-3, rtol=2e-3), \
        float(jnp.max(jnp.abs(out - ref)))

    # bf16-MXU path for the MLPs (v6e/v7x perf feedback), f32 accumulation.
    out_bf16 = jax.block_until_ready(fwd(sq_in, prepare_params(raw, use_bf16_mxu=True)))
    assert out_bf16.shape == (seq_len, batch, 1), out_bf16.shape
    assert jnp.allclose(out_bf16, ref, atol=5e-2, rtol=5e-2), \
        float(jnp.max(jnp.abs(out_bf16 - ref)))

    print("KERNEL_OK")
</pallas_src>

<mosaic_0001>
module attributes {stable_mosaic.version = 11 : i64} {
  func.func @_fused_mlp_kernel(%arg0: i32, %arg1: memref<64x128xf32, #tpu.memory_space<vmem>>, %arg2: memref<128x128xf32, #tpu.memory_space<vmem>>, %arg3: memref<1x128xf32, #tpu.memory_space<vmem>>, %arg4: memref<128x128xf32, #tpu.memory_space<vmem>>, %arg5: memref<1x128xf32, #tpu.memory_space<vmem>>, %arg6: memref<128x128xf32, #tpu.memory_space<vmem>>, %arg7: memref<1x128xf32, #tpu.memory_space<vmem>>, %arg8: memref<64x128xf32, #tpu.memory_space<vmem>>) attributes {dimension_semantics = [#tpu.dimension_semantics<parallel>], iteration_bounds = array<i64: 1>, scalar_prefetch = 0 : i64, scratch_operands = 0 : i64, tpu.core_type = #tpu.core_type<tc>, window_params = [{transform_indices = @transform_0, window_bounds = array<i64: 64, 128>}, {pipeline_mode = #tpu.pipeline_mode<synchronous>, transform_indices = @transform_1, window_bounds = array<i64: 128, 128>}, {pipeline_mode = #tpu.pipeline_mode<synchronous>, transform_indices = @transform_2, window_bounds = array<i64: 1, 128>}, {pipeline_mode = #tpu.pipeline_mode<synchronous>, transform_indices = @transform_3, window_bounds = array<i64: 128, 128>}, {pipeline_mode = #tpu.pipeline_mode<synchronous>, transform_indices = @transform_4, window_bounds = array<i64: 1, 128>}, {pipeline_mode = #tpu.pipeline_mode<synchronous>, transform_indices = @transform_5, window_bounds = array<i64: 128, 128>}, {pipeline_mode = #tpu.pipeline_mode<synchronous>, transform_indices = @transform_6, window_bounds = array<i64: 1, 128>}, {transform_indices = @transform_7, window_bounds = array<i64: 64, 128>}]} {
    %c0 = arith.constant 0 : index
    %c0_0 = arith.constant 0 : index
    %0 = vector.load %arg1[%c0, %c0_0] : memref<64x128xf32, #tpu.memory_space<vmem>>, vector<64x128xf32>
    %c0_1 = arith.constant 0 : index
    %c0_2 = arith.constant 0 : index
    %1 = vector.load %arg2[%c0_1, %c0_2] : memref<128x128xf32, #tpu.memory_space<vmem>>, vector<128x128xf32>
    %cst = arith.constant dense<0.000000e+00> : vector<64x128xf32>
    %2 = tpu.matmul %0, %1, %cst {dimension_numbers = #tpu.dot_dimension_numbers<[1], [0], [0], [1], [0, 0, 1, 1], [], []>} : vector<64x128xf32>, vector<128x128xf32>, vector<64x128xf32> -> vector<64x128xf32>
    %c0_3 = arith.constant 0 : index
    %c0_4 = arith.constant 0 : index
    %3 = vector.load %arg3[%c0_3, %c0_4] : memref<1x128xf32, #tpu.memory_space<vmem>>, vector<1x128xf32>
    %4 = vector.broadcast %3 : vector<1x128xf32> to vector<64x128xf32>
    %5 = arith.addf %2, %4 : vector<64x128xf32>
    %cst_5 = arith.constant 0.000000e+00 : f32
    %6 = vector.broadcast %cst_5 : f32 to vector<64x128xf32>
    %7 = arith.maximumf %5, %6 : vector<64x128xf32>
    %c0_6 = arith.constant 0 : index
    %c0_7 = arith.constant 0 : index
    %8 = vector.load %arg4[%c0_6, %c0_7] : memref<128x128xf32, #tpu.memory_space<vmem>>, vector<128x128xf32>
    %cst_8 = arith.constant dense<0.000000e+00> : vector<64x128xf32>
    %9 = tpu.matmul %7, %8, %cst_8 {dimension_numbers = #tpu.dot_dimension_numbers<[1], [0], [0], [1], [0, 0, 1, 1], [], []>} : vector<64x128xf32>, vector<128x128xf32>, vector<64x128xf32> -> vector<64x128xf32>
    %c0_9 = arith.constant 0 : index
    %c0_10 = arith.constant 0 : index
    %10 = vector.load %arg5[%c0_9, %c0_10] : memref<1x128xf32, #tpu.memory_space<vmem>>, vector<1x128xf32>
    %11 = vector.broadcast %10 : vector<1x128xf32> to vector<64x128xf32>
    %12 = arith.addf %9, %11 : vector<64x128xf32>
    %cst_11 = arith.constant 0.000000e+00 : f32
    %13 = vector.broadcast %cst_11 : f32 to vector<64x128xf32>
    %14 = arith.maximumf %12, %13 : vector<64x128xf32>
    %c0_12 = arith.constant 0 : index
    %c0_13 = arith.constant 0 : index
    %15 = vector.load %arg6[%c0_12, %c0_13] : memref<128x128xf32, #tpu.memory_space<vmem>>, vector<128x128xf32>
    %cst_14 = arith.constant dense<0.000000e+00> : vector<64x128xf32>
    %16 = tpu.matmul %14, %15, %cst_14 {dimension_numbers = #tpu.dot_dimension_numbers<[1], [0], [0], [1], [0, 0, 1, 1], [], []>} : vector<64x128xf32>, vector<128x128xf32>, vector<64x128xf32> -> vector<64x128xf32>
    %c0_15 = arith.constant 0 : index
    %c0_16 = arith.constant 0 : index
    %17 = vector.load %arg7[%c0_15, %c0_16] : memref<1x128xf32, #tpu.memory_space<vmem>>, vector<1x128xf32>
    %18 = vector.broadcast %17 : vector<1x128xf32> to vector<64x128xf32>
    %19 = arith.addf %16, %18 : vector<64x128xf32>
    %cst_17 = arith.constant 0.000000e+00 : f32
    %20 = vector.broadcast %cst_17 : f32 to vector<64x128xf32>
    %21 = arith.maximumf %19, %20 : vector<64x128xf32>
    %c0_18 = arith.constant 0 : index
    %c0_19 = arith.constant 0 : index
    %22 = vector.load %arg8[%c0_18, %c0_19] : memref<64x128xf32, #tpu.memory_space<vmem>>, vector<64x128xf32>
    tpu.vector_store %arg8[%c0_18, %c0_19], %21 {strides = array<i32>} : memref<64x128xf32, #tpu.memory_space<vmem>>, vector<64x128xf32>,
    return
  }
  func.func @transform_0(%arg0: i32) -> (i32, i32) {
    %c0_i32 = arith.constant 0 : i32
    %c0_i32_0 = arith.constant 0 : i32
    return %arg0, %c0_i32 : i32, i32
  }
  func.func @transform_1(%arg0: i32) -> (i32, i32) {
    %c0_i32 = arith.constant 0 : i32
    %c0_i32_0 = arith.constant 0 : i32
    %c0_i32_1 = arith.constant 0 : i32
    return %c0_i32, %c0_i32_0 : i32, i32
  }
  func.func @transform_2(%arg0: i32) -> (i32, i32) {
    %c0_i32 = arith.constant 0 : i32
    %c0_i32_0 = arith.constant 0 : i32
    %c0_i32_1 = arith.constant 0 : i32
    return %c0_i32, %c0_i32_0 : i32, i32
  }
  func.func @transform_3(%arg0: i32) -> (i32, i32) {
    %c0_i32 = arith.constant 0 : i32
    %c0_i32_0 = arith.constant 0 : i32
    %c0_i32_1 = arith.constant 0 : i32
    return %c0_i32, %c0_i32_0 : i32, i32
  }
  func.func @transform_4(%arg0: i32) -> (i32, i32) {
    %c0_i32 = arith.constant 0 : i32
    %c0_i32_0 = arith.constant 0 : i32
    %c0_i32_1 = arith.constant 0 : i32
    return %c0_i32, %c0_i32_0 : i32, i32
  }
  func.func @transform_5(%arg0: i32) -> (i32, i32) {
    %c0_i32 = arith.constant 0 : i32
    %c0_i32_0 = arith.constant 0 : i32
    %c0_i32_1 = arith.constant 0 : i32
    return %c0_i32, %c0_i32_0 : i32, i32
  }
  func.func @transform_6(%arg0: i32) -> (i32, i32) {
    %c0_i32 = arith.constant 0 : i32
    %c0_i32_0 = arith.constant 0 : i32
    %c0_i32_1 = arith.constant 0 : i32
    return %c0_i32, %c0_i32_0 : i32, i32
  }
  func.func @transform_7(%arg0: i32) -> (i32, i32) {
    %c0_i32 = arith.constant 0 : i32
    %c0_i32_0 = arith.constant 0 : i32
    return %arg0, %c0_i32 : i32, i32
  }
}

module attributes {stable_mosaic.version = 11 : i64} {
  func.func @_lstm_layer_kernel(%arg0: i32, %arg1: memref<1x8x128xf32, #tpu.memory_space<vmem>>, %arg2: memref<128x512xf32, #tpu.memory_space<vmem>>, %arg3: memref<128x512xf32, #tpu.memory_space<vmem>>, %arg4: memref<1x512xf32, #tpu.memory_space<vmem>>, %arg5: memref<1x8x128xf32, #tpu.memory_space<vmem>>, %arg6: memref<8x128xf32, #tpu.memory_space<vmem>>, %arg7: memref<8x128xf32, #tpu.memory_space<vmem>>) attributes {dimension_semantics = [#tpu.dimension_semantics<arbitrary>], iteration_bounds = array<i64: 8>, scalar_prefetch = 0 : i64, scratch_operands = 2 : i64, tpu.core_type = #tpu.core_type<tc>, window_params = [{transform_indices = @transform_0, window_bounds = array<i64: 1, 8, 128>}, {pipeline_mode = #tpu.pipeline_mode<synchronous>, transform_indices = @transform_1, window_bounds = array<i64: 128, 512>}, {pipeline_mode = #tpu.pipeline_mode<synchronous>, transform_indices = @transform_2, window_bounds = array<i64: 128, 512>}, {pipeline_mode = #tpu.pipeline_mode<synchronous>, transform_indices = @transform_3, window_bounds = array<i64: 1, 512>}, {transform_indices = @transform_4, window_bounds = array<i64: 1, 8, 128>}]} {
    %c0_i32 = arith.constant 0 : i32
    %0 = arith.cmpi eq, %arg0, %c0_i32 : i32
    %1 = arith.extui %0 : i1 to i32
    %c0_i32_0 = arith.constant 0 : i32
    %2 = arith.cmpi ne, %1, %c0_i32_0 : i32
    scf.if %2 {
      %cst_30 = arith.constant 0.000000e+00 : f32
      %51 = vector.broadcast %cst_30 : f32 to vector<8x128xf32>
      %c0_31 = arith.constant 0 : index
      %c0_32 = arith.constant 0 : index
      %52 = vector.load %arg6[%c0_31, %c0_32] : memref<8x128xf32, #tpu.memory_space<vmem>>, vector<8x128xf32>
      tpu.vector_store %arg6[%c0_31, %c0_32], %51 {strides = array<i32>} : memref<8x128xf32, #tpu.memory_space<vmem>>, vector<8x128xf32>,
      %cst_33 = arith.constant 0.000000e+00 : f32
      %53 = vector.broadcast %cst_33 : f32 to vector<8x128xf32>
      %c0_34 = arith.constant 0 : index
      %c0_35 = arith.constant 0 : index
      %54 = vector.load %arg7[%c0_34, %c0_35] : memref<8x128xf32, #tpu.memory_space<vmem>>, vector<8x128xf32>
      tpu.vector_store %arg7[%c0_34, %c0_35], %53 {strides = array<i32>} : memref<8x128xf32, #tpu.memory_space<vmem>>, vector<8x128xf32>,
    } else {
    }
    %c0 = arith.constant 0 : index
    %c0_1 = arith.constant 0 : index
    %c0_2 = arith.constant 0 : index
    %3 = vector.load %arg1[%c0, %c0_1, %c0_2] : memref<1x8x128xf32, #tpu.memory_space<vmem>>, vector<1x8x128xf32>
    %4 = vector.shape_cast %3 : vector<1x8x128xf32> to vector<8x128xf32>
    %c0_3 = arith.constant 0 : index
    %c0_4 = arith.constant 0 : index
    %5 = vector.load %arg2[%c0_3, %c0_4] : memref<128x512xf32, #tpu.memory_space<vmem>>, vector<128x512xf32>
    %cst = arith.constant dense<0.000000e+00> : vector<8x512xf32>
    %6 = tpu.matmul %4, %5, %cst {dimension_numbers = #tpu.dot_dimension_numbers<[1], [0], [0], [1], [0, 0, 1, 1], [], []>} : vector<8x128xf32>, vector<128x512xf32>, vector<8x512xf32> -> vector<8x512xf32>
    %c0_5 = arith.constant 0 : index
    %c0_6 = arith.constant 0 : index
    %7 = vector.load %arg6[%c0_5, %c0_6] : memref<8x128xf32, #tpu.memory_space<vmem>>, vector<8x128xf32>
    %c0_7 = arith.constant 0 : index
    %c0_8 = arith.constant 0 : index
    %8 = vector.load %arg3[%c0_7, %c0_8] : memref<128x512xf32, #tpu.memory_space<vmem>>, vector<128x512xf32>
    %cst_9 = arith.constant dense<0.000000e+00> : vector<8x512xf32>
    %9 = tpu.matmul %7, %8, %cst_9 {dimension_numbers = #tpu.dot_dimension_numbers<[1], [0], [0], [1], [0, 0, 1, 1], [], []>} : vector<8x128xf32>, vector<128x512xf32>, vector<8x512xf32> -> vector<8x512xf32>
    %10 = arith.addf %6, %9 : vector<8x512xf32>
    %c0_10 = arith.constant 0 : index
    %c0_11 = arith.constant 0 : index
    %11 = vector.load %arg4[%c0_10, %c0_11] : memref<1x512xf32, #tpu.memory_space<vmem>>, vector<1x512xf32>
    %12 = vector.broadcast %11 : vector<1x512xf32> to vector<8x512xf32>
    %13 = arith.addf %10, %12 : vector<8x512xf32>
    %14 = vector.extract_strided_slice %13 {offsets = [0, 0], sizes = [8, 128], strides = [1, 1]} : vector<8x512xf32> to vector<8x128xf32>
    %cst_12 = arith.constant 0.000000e+00 : f32
    %15 = vector.broadcast %cst_12 : f32 to vector<8x128xf32>
    %16 = arith.subf %15, %14 : vector<8x128xf32>
    %17 = math.exp %16 : vector<8x128xf32>
    %cst_13 = arith.constant 1.000000e+00 : f32
    %18 = vector.broadcast %cst_13 : f32 to vector<8x128xf32>
    %19 = arith.addf %18, %17 : vector<8x128xf32>
    %cst_14 = arith.constant 1.000000e+00 : f32
    %20 = vector.broadcast %cst_14 : f32 to vector<8x128xf32>
    %21 = arith.divf %20, %19 : vector<8x128xf32>
    %22 = vector.extract_strided_slice %13 {offsets = [0, 128], sizes = [8, 128], strides = [1, 1]} : vector<8x512xf32> to vector<8x128xf32>
    %cst_15 = arith.constant 0.000000e+00 : f32
    %23 = vector.broadcast %cst_15 : f32 to vector<8x128xf32>
    %24 = arith.subf %23, %22 : vector<8x128xf32>
    %25 = math.exp %24 : vector<8x128xf32>
    %cst_16 = arith.constant 1.000000e+00 : f32
    %26 = vector.broadcast %cst_16 : f32 to vector<8x128xf32>
    %27 = arith.addf %26, %25 : vector<8x128xf32>
    %cst_17 = arith.constant 1.000000e+00 : f32
    %28 = vector.broadcast %cst_17 : f32 to vector<8x128xf32>
    %29 = arith.divf %28, %27 : vector<8x128xf32>
    %30 = vector.extract_strided_slice %13 {offsets = [0, 256], sizes = [8, 128], strides = [1, 1]} : vector<8x512xf32> to vector<8x128xf32>
    %31 = math.tanh %30 : vector<8x128xf32>
    %32 = vector.extract_strided_slice %13 {offsets = [0, 384], sizes = [8, 128], strides = [1, 1]} : vector<8x512xf32> to vector<8x128xf32>
    %cst_18 = arith.constant 0.000000e+00 : f32
    %33 = vector.broadcast %cst_18 : f32 to vector<8x128xf32>
    %34 = arith.subf %33, %32 : vector<8x128xf32>
    %35 = math.exp %34 : vector<8x128xf32>
    %cst_19 = arith.constant 1.000000e+00 : f32
    %36 = vector.broadcast %cst_19 : f32 to vector<8x128xf32>
    %37 = arith.addf %36, %35 : vector<8x128xf32>
    %cst_20 = arith.constant 1.000000e+00 : f32
    %38 = vector.broadcast %cst_20 : f32 to vector<8x128xf32>
    %39 = arith.divf %38, %37 : vector<8x128xf32>
    %c0_21 = arith.constant 0 : index
    %c0_22 = arith.constant 0 : index
    %40 = vector.load %arg7[%c0_21, %c0_22] : memref<8x128xf32, #tpu.memory_space<vmem>>, vector<8x128xf32>
    %41 = arith.mulf %29, %40 : vector<8x128xf32>
    %42 = arith.mulf %21, %31 : vector<8x128xf32>
    %43 = arith.addf %41, %42 : vector<8x128xf32>
    %44 = math.tanh %43 : vector<8x128xf32>
    %45 = arith.mulf %39, %44 : vector<8x128xf32>
    %c0_23 = arith.constant 0 : index
    %c0_24 = arith.constant 0 : index
    %46 = vector.load %arg7[%c0_23, %c0_24] : memref<8x128xf32, #tpu.memory_space<vmem>>, vector<8x128xf32>
    tpu.vector_store %arg7[%c0_23, %c0_24], %43 {strides = array<i32>} : memref<8x128xf32, #tpu.memory_space<vmem>>, vector<8x128xf32>,
    %c0_25 = arith.constant 0 : index
    %c0_26 = arith.constant 0 : index
    %47 = vector.load %arg6[%c0_25, %c0_26] : memref<8x128xf32, #tpu.memory_space<vmem>>, vector<8x128xf32>
    tpu.vector_store %arg6[%c0_25, %c0_26], %45 {strides = array<i32>} : memref<8x128xf32, #tpu.memory_space<vmem>>, vector<8x128xf32>,
    %c0_27 = arith.constant 0 : index
    %c0_28 = arith.constant 0 : index
    %c0_29 = arith.constant 0 : index
    %48 = vector.load %arg5[%c0_27, %c0_28, %c0_29] : memref<1x8x128xf32, #tpu.memory_space<vmem>>, vector<1x8x128xf32>
    %49 = vector.shape_cast %48 : vector<1x8x128xf32> to vector<8x128xf32>
    %50 = vector.shape_cast %45 : vector<8x128xf32> to vector<1x8x128xf32>
    tpu.vector_store %arg5[%c0_27, %c0_28, %c0_29], %50 {strides = array<i32>} : memref<1x8x128xf32, #tpu.memory_space<vmem>>, vector<1x8x128xf32>,
    return
  }
  func.func @transform_0(%arg0: i32) -> (i32, i32, i32) {
    %c0_i32 = arith.constant 0 : i32
    %c0_i32_0 = arith.constant 0 : i32
    %c0_i32_1 = arith.constant 0 : i32
    return %arg0, %c0_i32, %c0_i32_0 : i32, i32, i32
  }
  func.func @transform_1(%arg0: i32) -> (i32, i32) {
    %c0_i32 = arith.constant 0 : i32
    %c0_i32_0 = arith.constant 0 : i32
    %c0_i32_1 = arith.constant 0 : i32
    return %c0_i32, %c0_i32_0 : i32, i32
  }
  func.func @transform_2(%arg0: i32) -> (i32, i32) {
    %c0_i32 = arith.constant 0 : i32
    %c0_i32_0 = arith.constant 0 : i32
    %c0_i32_1 = arith.constant 0 : i32
    return %c0_i32, %c0_i32_0 : i32, i32
  }
  func.func @transform_3(%arg0: i32) -> (i32, i32) {
    %c0_i32 = arith.constant 0 : i32
    %c0_i32_0 = arith.constant 0 : i32
    %c0_i32_1 = arith.constant 0 : i32
    return %c0_i32, %c0_i32_0 : i32, i32
  }
  func.func @transform_4(%arg0: i32) -> (i32, i32, i32) {
    %c0_i32 = arith.constant 0 : i32
    %c0_i32_0 = arith.constant 0 : i32
    %c0_i32_1 = arith.constant 0 : i32
    return %arg0, %c0_i32, %c0_i32_0 : i32, i32, i32
  }
}

module attributes {stable_mosaic.version = 11 : i64} {
  func.func @_lstm_layer_kernel(%arg0: i32, %arg1: memref<1x8x128xf32, #tpu.memory_space<vmem>>, %arg2: memref<128x512xf32, #tpu.memory_space<vmem>>, %arg3: memref<128x512xf32, #tpu.memory_space<vmem>>, %arg4: memref<1x512xf32, #tpu.memory_space<vmem>>, %arg5: memref<1x8x128xf32, #tpu.memory_space<vmem>>, %arg6: memref<8x128xf32, #tpu.memory_space<vmem>>, %arg7: memref<8x128xf32, #tpu.memory_space<vmem>>) attributes {dimension_semantics = [#tpu.dimension_semantics<arbitrary>], iteration_bounds = array<i64: 8>, scalar_prefetch = 0 : i64, scratch_operands = 2 : i64, tpu.core_type = #tpu.core_type<tc>, window_params = [{transform_indices = @transform_0, window_bounds = array<i64: 1, 8, 128>}, {pipeline_mode = #tpu.pipeline_mode<synchronous>, transform_indices = @transform_1, window_bounds = array<i64: 128, 512>}, {pipeline_mode = #tpu.pipeline_mode<synchronous>, transform_indices = @transform_2, window_bounds = array<i64: 128, 512>}, {pipeline_mode = #tpu.pipeline_mode<synchronous>, transform_indices = @transform_3, window_bounds = array<i64: 1, 512>}, {transform_indices = @transform_4, window_bounds = array<i64: 1, 8, 128>}]} {
    %c0_i32 = arith.constant 0 : i32
    %0 = arith.cmpi eq, %arg0, %c0_i32 : i32
    %1 = arith.extui %0 : i1 to i32
    %c0_i32_0 = arith.constant 0 : i32
    %2 = arith.cmpi ne, %1, %c0_i32_0 : i32
    scf.if %2 {
      %cst_30 = arith.constant 0.000000e+00 : f32
      %51 = vector.broadcast %cst_30 : f32 to vector<8x128xf32>
      %c0_31 = arith.constant 0 : index
      %c0_32 = arith.constant 0 : index
      %52 = vector.load %arg6[%c0_31, %c0_32] : memref<8x128xf32, #tpu.memory_space<vmem>>, vector<8x128xf32>
      tpu.vector_store %arg6[%c0_31, %c0_32], %51 {strides = array<i32>} : memref<8x128xf32, #tpu.memory_space<vmem>>, vector<8x128xf32>,
      %cst_33 = arith.constant 0.000000e+00 : f32
      %53 = vector.broadcast %cst_33 : f32 to vector<8x128xf32>
      %c0_34 = arith.constant 0 : index
      %c0_35 = arith.constant 0 : index
      %54 = vector.load %arg7[%c0_34, %c0_35] : memref<8x128xf32, #tpu.memory_space<vmem>>, vector<8x128xf32>
      tpu.vector_store %arg7[%c0_34, %c0_35], %53 {strides = array<i32>} : memref<8x128xf32, #tpu.memory_space<vmem>>, vector<8x128xf32>,
    } else {
    }
    %c0 = arith.constant 0 : index
    %c0_1 = arith.constant 0 : index
    %c0_2 = arith.constant 0 : index
    %3 = vector.load %arg1[%c0, %c0_1, %c0_2] : memref<1x8x128xf32, #tpu.memory_space<vmem>>, vector<1x8x128xf32>
    %4 = vector.shape_cast %3 : vector<1x8x128xf32> to vector<8x128xf32>
    %c0_3 = arith.constant 0 : index
    %c0_4 = arith.constant 0 : index
    %5 = vector.load %arg2[%c0_3, %c0_4] : memref<128x512xf32, #tpu.memory_space<vmem>>, vector<128x512xf32>
    %cst = arith.constant dense<0.000000e+00> : vector<8x512xf32>
    %6 = tpu.matmul %4, %5, %cst {dimension_numbers = #tpu.dot_dimension_numbers<[1], [0], [0], [1], [0, 0, 1, 1], [], []>} : vector<8x128xf32>, vector<128x512xf32>, vector<8x512xf32> -> vector<8x512xf32>
    %c0_5 = arith.constant 0 : index
    %c0_6 = arith.constant 0 : index
    %7 = vector.load %arg6[%c0_5, %c0_6] : memref<8x128xf32, #tpu.memory_space<vmem>>, vector<8x128xf32>
    %c0_7 = arith.constant 0 : index
    %c0_8 = arith.constant 0 : index
    %8 = vector.load %arg3[%c0_7, %c0_8] : memref<128x512xf32, #tpu.memory_space<vmem>>, vector<128x512xf32>
    %cst_9 = arith.constant dense<0.000000e+00> : vector<8x512xf32>
    %9 = tpu.matmul %7, %8, %cst_9 {dimension_numbers = #tpu.dot_dimension_numbers<[1], [0], [0], [1], [0, 0, 1, 1], [], []>} : vector<8x128xf32>, vector<128x512xf32>, vector<8x512xf32> -> vector<8x512xf32>
    %10 = arith.addf %6, %9 : vector<8x512xf32>
    %c0_10 = arith.constant 0 : index
    %c0_11 = arith.constant 0 : index
    %11 = vector.load %arg4[%c0_10, %c0_11] : memref<1x512xf32, #tpu.memory_space<vmem>>, vector<1x512xf32>
    %12 = vector.broadcast %11 : vector<1x512xf32> to vector<8x512xf32>
    %13 = arith.addf %10, %12 : vector<8x512xf32>
    %14 = vector.extract_strided_slice %13 {offsets = [0, 0], sizes = [8, 128], strides = [1, 1]} : vector<8x512xf32> to vector<8x128xf32>
    %cst_12 = arith.constant 0.000000e+00 : f32
    %15 = vector.broadcast %cst_12 : f32 to vector<8x128xf32>
    %16 = arith.subf %15, %14 : vector<8x128xf32>
    %17 = math.exp %16 : vector<8x128xf32>
    %cst_13 = arith.constant 1.000000e+00 : f32
    %18 = vector.broadcast %cst_13 : f32 to vector<8x128xf32>
    %19 = arith.addf %18, %17 : vector<8x128xf32>
    %cst_14 = arith.constant 1.000000e+00 : f32
    %20 = vector.broadcast %cst_14 : f32 to vector<8x128xf32>
    %21 = arith.divf %20, %19 : vector<8x128xf32>
    %22 = vector.extract_strided_slice %13 {offsets = [0, 128], sizes = [8, 128], strides = [1, 1]} : vector<8x512xf32> to vector<8x128xf32>
    %cst_15 = arith.constant 0.000000e+00 : f32
    %23 = vector.broadcast %cst_15 : f32 to vector<8x128xf32>
    %24 = arith.subf %23, %22 : vector<8x128xf32>
    %25 = math.exp %24 : vector<8x128xf32>
    %cst_16 = arith.constant 1.000000e+00 : f32
    %26 = vector.broadcast %cst_16 : f32 to vector<8x128xf32>
    %27 = arith.addf %26, %25 : vector<8x128xf32>
    %cst_17 = arith.constant 1.000000e+00 : f32
    %28 = vector.broadcast %cst_17 : f32 to vector<8x128xf32>
    %29 = arith.divf %28, %27 : vector<8x128xf32>
    %30 = vector.extract_strided_slice %13 {offsets = [0, 256], sizes = [8, 128], strides = [1, 1]} : vector<8x512xf32> to vector<8x128xf32>
    %31 = math.tanh %30 : vector<8x128xf32>
    %32 = vector.extract_strided_slice %13 {offsets = [0, 384], sizes = [8, 128], strides = [1, 1]} : vector<8x512xf32> to vector<8x128xf32>
    %cst_18 = arith.constant 0.000000e+00 : f32
    %33 = vector.broadcast %cst_18 : f32 to vector<8x128xf32>
    %34 = arith.subf %33, %32 : vector<8x128xf32>
    %35 = math.exp %34 : vector<8x128xf32>
    %cst_19 = arith.constant 1.000000e+00 : f32
    %36 = vector.broadcast %cst_19 : f32 to vector<8x128xf32>
    %37 = arith.addf %36, %35 : vector<8x128xf32>
    %cst_20 = arith.constant 1.000000e+00 : f32
    %38 = vector.broadcast %cst_20 : f32 to vector<8x128xf32>
    %39 = arith.divf %38, %37 : vector<8x128xf32>
    %c0_21 = arith.constant 0 : index
    %c0_22 = arith.constant 0 : index
    %40 = vector.load %arg7[%c0_21, %c0_22] : memref<8x128xf32, #tpu.memory_space<vmem>>, vector<8x128xf32>
    %41 = arith.mulf %29, %40 : vector<8x128xf32>
    %42 = arith.mulf %21, %31 : vector<8x128xf32>
    %43 = arith.addf %41, %42 : vector<8x128xf32>
    %44 = math.tanh %43 : vector<8x128xf32>
    %45 = arith.mulf %39, %44 : vector<8x128xf32>
    %c0_23 = arith.constant 0 : index
    %c0_24 = arith.constant 0 : index
    %46 = vector.load %arg7[%c0_23, %c0_24] : memref<8x128xf32, #tpu.memory_space<vmem>>, vector<8x128xf32>
    tpu.vector_store %arg7[%c0_23, %c0_24], %43 {strides = array<i32>} : memref<8x128xf32, #tpu.memory_space<vmem>>, vector<8x128xf32>,
    %c0_25 = arith.constant 0 : index
    %c0_26 = arith.constant 0 : index
    %47 = vector.load %arg6[%c0_25, %c0_26] : memref<8x128xf32, #tpu.memory_space<vmem>>, vector<8x128xf32>
    tpu.vector_store %arg6[%c0_25, %c0_26], %45 {strides = array<i32>} : memref<8x128xf32, #tpu.memory_space<vmem>>, vector<8x128xf32>,
    %c0_27 = arith.constant 0 : index
    %c0_28 = arith.constant 0 : index
    %c0_29 = arith.constant 0 : index
    %48 = vector.load %arg5[%c0_27, %c0_28, %c0_29] : memref<1x8x128xf32, #tpu.memory_space<vmem>>, vector<1x8x128xf32>
    %49 = vector.shape_cast %48 : vector<1x8x128xf32> to vector<8x128xf32>
    %50 = vector.shape_cast %45 : vector<8x128xf32> to vector<1x8x128xf32>
    tpu.vector_store %arg5[%c0_27, %c0_28, %c0_29], %50 {strides = array<i32>} : memref<1x8x128xf32, #tpu.memory_space<vmem>>, vector<1x8x128xf32>,
    return
  }
  func.func @transform_0(%arg0: i32) -> (i32, i32, i32) {
    %c0_i32 = arith.constant 0 : i32
    %c0_i32_0 = arith.constant 0 : i32
    %c0_i32_1 = arith.constant 0 : i32
    return %arg0, %c0_i32, %c0_i32_0 : i32, i32, i32
  }
  func.func @transform_1(%arg0: i32) -> (i32, i32) {
    %c0_i32 = arith.constant 0 : i32
    %c0_i32_0 = arith.constant 0 : i32
    %c0_i32_1 = arith.constant 0 : i32
    return %c0_i32, %c0_i32_0 : i32, i32
  }
  func.func @transform_2(%arg0: i32) -> (i32, i32) {
    %c0_i32 = arith.constant 0 : i32
    %c0_i32_0 = arith.constant 0 : i32
    %c0_i32_1 = arith.constant 0 : i32
    return %c0_i32, %c0_i32_0 : i32, i32
  }
  func.func @transform_3(%arg0: i32) -> (i32, i32) {
    %c0_i32 = arith.constant 0 : i32
    %c0_i32_0 = arith.constant 0 : i32
    %c0_i32_1 = arith.constant 0 : i32
    return %c0_i32, %c0_i32_0 : i32, i32
  }
  func.func @transform_4(%arg0: i32) -> (i32, i32, i32) {
    %c0_i32 = arith.constant 0 : i32
    %c0_i32_0 = arith.constant 0 : i32
    %c0_i32_1 = arith.constant 0 : i32
    return %arg0, %c0_i32, %c0_i32_0 : i32, i32, i32
  }
}

module attributes {stable_mosaic.version = 11 : i64} {
  func.func @_fused_mlp_kernel(%arg0: i32, %arg1: memref<64x128xf32, #tpu.memory_space<vmem>>, %arg2: memref<128x128xf32, #tpu.memory_space<vmem>>, %arg3: memref<1x128xf32, #tpu.memory_space<vmem>>, %arg4: memref<128x128xf32, #tpu.memory_space<vmem>>, %arg5: memref<1x128xf32, #tpu.memory_space<vmem>>, %arg6: memref<64x128xf32, #tpu.memory_space<vmem>>) attributes {dimension_semantics = [#tpu.dimension_semantics<parallel>], iteration_bounds = array<i64: 1>, scalar_prefetch = 0 : i64, scratch_operands = 0 : i64, tpu.core_type = #tpu.core_type<tc>, window_params = [{transform_indices = @transform_0, window_bounds = array<i64: 64, 128>}, {pipeline_mode = #tpu.pipeline_mode<synchronous>, transform_indices = @transform_1, window_bounds = array<i64: 128, 128>}, {pipeline_mode = #tpu.pipeline_mode<synchronous>, transform_indices = @transform_2, window_bounds = array<i64: 1, 128>}, {pipeline_mode = #tpu.pipeline_mode<synchronous>, transform_indices = @transform_3, window_bounds = array<i64: 128, 128>}, {pipeline_mode = #tpu.pipeline_mode<synchronous>, transform_indices = @transform_4, window_bounds = array<i64: 1, 128>}, {transform_indices = @transform_5, window_bounds = array<i64: 64, 128>}]} {
    %c0 = arith.constant 0 : index
    %c0_0 = arith.constant 0 : index
    %0 = vector.load %arg1[%c0, %c0_0] : memref<64x128xf32, #tpu.memory_space<vmem>>, vector<64x128xf32>
    %c0_1 = arith.constant 0 : index
    %c0_2 = arith.constant 0 : index
    %1 = vector.load %arg2[%c0_1, %c0_2] : memref<128x128xf32, #tpu.memory_space<vmem>>, vector<128x128xf32>
    %cst = arith.constant dense<0.000000e+00> : vector<64x128xf32>
    %2 = tpu.matmul %0, %1, %cst {dimension_numbers = #tpu.dot_dimension_numbers<[1], [0], [0], [1], [0, 0, 1, 1], [], []>} : vector<64x128xf32>, vector<128x128xf32>, vector<64x128xf32> -> vector<64x128xf32>
    %c0_3 = arith.constant 0 : index
    %c0_4 = arith.constant 0 : index
    %3 = vector.load %arg3[%c0_3, %c0_4] : memref<1x128xf32, #tpu.memory_space<vmem>>, vector<1x128xf32>
    %4 = vector.broadcast %3 : vector<1x128xf32> to vector<64x128xf32>
    %5 = arith.addf %2, %4 : vector<64x128xf32>
    %cst_5 = arith.constant 0.000000e+00 : f32
    %6 = vector.broadcast %cst_5 : f32 to vector<64x128xf32>
    %7 = arith.maximumf %5, %6 : vector<64x128xf32>
    %c0_6 = arith.constant 0 : index
    %c0_7 = arith.constant 0 : index
    %8 = vector.load %arg4[%c0_6, %c0_7] : memref<128x128xf32, #tpu.memory_space<vmem>>, vector<128x128xf32>
    %cst_8 = arith.constant dense<0.000000e+00> : vector<64x128xf32>
    %9 = tpu.matmul %7, %8, %cst_8 {dimension_numbers = #tpu.dot_dimension_numbers<[1], [0], [0], [1], [0, 0, 1, 1], [], []>} : vector<64x128xf32>, vector<128x128xf32>, vector<64x128xf32> -> vector<64x128xf32>
    %c0_9 = arith.constant 0 : index
    %c0_10 = arith.constant 0 : index
    %10 = vector.load %arg5[%c0_9, %c0_10] : memref<1x128xf32, #tpu.memory_space<vmem>>, vector<1x128xf32>
    %11 = vector.broadcast %10 : vector<1x128xf32> to vector<64x128xf32>
    %12 = arith.addf %9, %11 : vector<64x128xf32>
    %cst_11 = arith.constant 0.000000e+00 : f32
    %13 = vector.broadcast %cst_11 : f32 to vector<64x128xf32>
    %14 = arith.maximumf %12, %13 : vector<64x128xf32>
    %c0_12 = arith.constant 0 : index
    %c0_13 = arith.constant 0 : index
    %15 = vector.load %arg6[%c0_12, %c0_13] : memref<64x128xf32, #tpu.memory_space<vmem>>, vector<64x128xf32>
    tpu.vector_store %arg6[%c0_12, %c0_13], %14 {strides = array<i32>} : memref<64x128xf32, #tpu.memory_space<vmem>>, vector<64x128xf32>,
    return
  }
  func.func @transform_0(%arg0: i32) -> (i32, i32) {
    %c0_i32 = arith.constant 0 : i32
    %c0_i32_0 = arith.constant 0 : i32
    return %arg0, %c0_i32 : i32, i32
  }
  func.func @transform_1(%arg0: i32) -> (i32, i32) {
    %c0_i32 = arith.constant 0 : i32
    %c0_i32_0 = arith.constant 0 : i32
    %c0_i32_1 = arith.constant 0 : i32
    return %c0_i32, %c0_i32_0 : i32, i32
  }
  func.func @transform_2(%arg0: i32) -> (i32, i32) {
    %c0_i32 = arith.constant 0 : i32
    %c0_i32_0 = arith.constant 0 : i32
    %c0_i32_1 = arith.constant 0 : i32
    return %c0_i32, %c0_i32_0 : i32, i32
  }
  func.func @transform_3(%arg0: i32) -> (i32, i32) {
    %c0_i32 = arith.constant 0 : i32
    %c0_i32_0 = arith.constant 0 : i32
    %c0_i32_1 = arith.constant 0 : i32
    return %c0_i32, %c0_i32_0 : i32, i32
  }
  func.func @transform_4(%arg0: i32) -> (i32, i32) {
    %c0_i32 = arith.constant 0 : i32
    %c0_i32_0 = arith.constant 0 : i32
    %c0_i32_1 = arith.constant 0 : i32
    return %c0_i32, %c0_i32_0 : i32, i32
  }
  func.func @transform_5(%arg0: i32) -> (i32, i32) {
    %c0_i32 = arith.constant 0 : i32
    %c0_i32_0 = arith.constant 0 : i32
    return %arg0, %c0_i32 : i32, i32
  }
}

</mosaic_0001>

<llo_original>
// kernel: rlu_forward.4
$region0: #{rlu_forward.4}
  #allocation0 [shape = 'u32[]', space=smem, size = 0x4, offset = 0x4, fixed_abs, tag = 'smem constant byte address 0x4 - core index']
  #allocation1 [shape = 'u32[144,128]{1,0:T(1,128)}', space=vmem, size = 0x12000, scoped, tag = 'internal scratch']
  %s0 = inlined_call_operand.vmem [shape: f32[64,128], index: 0, kind: input, shape index: {}]
  %s1 = inlined_call_operand.hbm [shape: f32[128,128], index: 1, kind: input, shape index: {}]
  %s2 = inlined_call_operand.vmem [shape: f32[1,128], index: 2, kind: input, shape index: {}]
  %s3 = inlined_call_operand.hbm [shape: f32[128,128], index: 3, kind: input, shape index: {}]
  %s4 = inlined_call_operand.vmem [shape: f32[1,128], index: 4, kind: input, shape index: {}]
  %s5 = inlined_call_operand.hbm [shape: f32[128,128], index: 5, kind: input, shape index: {}]
  %s6 = inlined_call_operand.vmem [shape: f32[1,128], index: 6, kind: input, shape index: {}]
  %s7 = inlined_call_operand.vmem [shape: f32[64,128], index: 7, kind: output, shape index: {}]
  %s8 = sld [smem:[#allocation0]]
  $region50: #{rlu_forward.4} parent=0
    _
  %s10 = ssub.s32 1, %s8
  %s11 = scalar_select 0, %s10, %s8
  $region1: #{rlu_forward.4} parent=0
    #allocation2 [shape = 'u8[65536]{0}', space=vmem, size = 0x10000, scoped, tag = 'input window, operand 1, single buffered']
    #allocation3 [shape = 's32[1]{0}', space=sflag, size = 0x4, scoped, tag = 'scoped memory for rlu_forward.4']
    #allocation4 [shape = 'u8[65536]{0}', space=vmem, size = 0x10000, scoped, tag = 'input window, operand 3, single buffered']
    #allocation5 [shape = 's32[1]{0}', space=sflag, size = 0x4, scoped, tag = 'scoped memory for rlu_forward.4']
    #allocation6 [shape = 'u8[65536]{0}', space=vmem, size = 0x10000, scoped, tag = 'input window, operand 5, single buffered']
    %12 = vsyncpa [#allocation3], 0
    %13 = vsyncpa [#allocation5], 0
    // Predicated region
    $region2: #{rlu_forward.4} parent=1 // pred_check
      _
    $region3: #{rlu_forward.4} parent=1 // pred_check_branch
      %15 = sbr.rel (0) target = $region5
    $region4: #{rlu_forward.4} parent=1 // pred_region
      _
    $region5: #{rlu_forward.4} parent=1 // pred_fallthru
      _
    // Predicated region
    $region6: #{rlu_forward.4} parent=1 // pred_check
      _
    $region7: #{rlu_forward.4} parent=1 // pred_check_branch
      %17 = sbr.rel (0) target = $region9
    $region8: #{rlu_forward.4} parent=1 // pred_region
      %s19 = ssub.s32 2048, 2048
      %20 = vsyncadd [#allocation3], %s19
      %s21 = sshll.u32 [#allocation2], 4
      %s22 = int_to_ptr.vmem [resolvable:$true] %s21
      %27 = dma.hbm_to_vmem [thread:$0]  %s1, 2048, %s22, [#allocation3], 128, 128, 8
    $region9: #{rlu_forward.4} parent=1 // pred_fallthru
      _
    // Predicated region
    $region10: #{rlu_forward.4} parent=1 // pred_check
      _
    $region11: #{rlu_forward.4} parent=1 // pred_check_branch
      %29 = sbr.rel (0) target = $region13
    $region12: #{rlu_forward.4} parent=1 // pred_region
      _
    $region13: #{rlu_forward.4} parent=1 // pred_fallthru
      _
    // Predicated region
    $region14: #{rlu_forward.4} parent=1 // pred_check
      _
    $region15: #{rlu_forward.4} parent=1 // pred_check_branch
      %31 = sbr.rel (0) target = $region17
    $region16: #{rlu_forward.4} parent=1 // pred_region
      %s33 = ssub.s32 2048, 2048
      %34 = vsyncadd [#allocation5], %s33
      %s35 = sshll.u32 [#allocation4], 4
      %s36 = int_to_ptr.vmem [resolvable:$true] %s35
      %41 = dma.hbm_to_vmem [thread:$0]  %s3, 2048, %s36, [#allocation5], 128, 128, 8
    $region17: #{rlu_forward.4} parent=1 // pred_fallthru
      _
    // Predicated region
    $region18: #{rlu_forward.4} parent=1 // pred_check
      _
    $region19: #{rlu_forward.4} parent=1 // pred_check_branch
      %43 = sbr.rel (0) target = $region21
    $region20: #{rlu_forward.4} parent=1 // pred_region
      _
    $region21: #{rlu_forward.4} parent=1 // pred_fallthru
      _
    // Predicated region
    $region22: #{rlu_forward.4} parent=1 // pred_check
      _
    $region23: #{rlu_forward.4} parent=1 // pred_check_branch
      %45 = sbr.rel (0) target = $region25
    $region24: #{rlu_forward.4} parent=1 // pred_region
      %s47 = ssub.s32 2048, 2048
      %48 = vsyncadd [#allocation5], %s47
      %s49 = sshll.u32 [#allocation6], 4
      %s50 = int_to_ptr.vmem [resolvable:$true] %s49
      %55 = dma.hbm_to_vmem [thread:$0]  %s5, 2048, %s50, [#allocation5], 128, 128, 8
    $region25: #{rlu_forward.4} parent=1 // pred_fallthru
      _
    // Predicated region
    $region26: #{rlu_forward.4} parent=1 // pred_check
      _
    $region27: #{rlu_forward.4} parent=1 // pred_check_branch
      %57 = sbr.rel (0) target = $region29
    $region28: #{rlu_forward.4} parent=1 // pred_region
      _
    $region29: #{rlu_forward.4} parent=1 // pred_fallthru
      _
    // Predicated region
    $region30: #{rlu_forward.4} parent=1 // pred_check
      _
    $region31: #{rlu_forward.4} parent=1 // pred_check_branch
      %59 = sbr.rel (0) target = $region33
    $region32: #{rlu_forward.4} parent=1 // pred_region
      %60 = dma.done [#allocation3], 2048
    $region33: #{rlu_forward.4} parent=1 // pred_fallthru
      _
    // Predicated region
    $region34: #{rlu_forward.4} parent=1 // pred_check
      _
    $region35: #{rlu_forward.4} parent=1 // pred_check_branch
      %62 = sbr.rel (0) target = $region37
    $region36: #{rlu_forward.4} parent=1 // pred_region
      %63 = dma.done [#allocation5], 2048
    $region37: #{rlu_forward.4} parent=1 // pred_fallthru
      _
    // Predicated region
    $region38: #{rlu_forward.4} parent=1 // pred_check
      _
    $region39: #{rlu_forward.4} parent=1 // pred_check_branch
      %65 = sbr.rel (0) target = $region41
    $region40: #{rlu_forward.4} parent=1 // pred_region
      %66 = dma.done [#allocation5], 2048
    $region41: #{rlu_forward.4} parent=1 // pred_fallthru
      _
    %v67 = vld [vmem:[%s0] sm:$0xff]
    %v68 = vld [vmem:[%s0 + $0x8] sm:$0xff]
    %v69 = vld [vmem:[%s0 + $0x10] sm:$0xff]
    %v70 = vld [vmem:[%s0 + $0x18] sm:$0xff]
    %v71 = vld [vmem:[%s0 + $0x20] sm:$0xff]
    %v72 = vld [vmem:[%s0 + $0x28] sm:$0xff]
    %v73 = vld [vmem:[%s0 + $0x30] sm:$0xff]
    %v74 = vld [vmem:[%s0 + $0x38] sm:$0xff]
    %v75 = vld [vmem:[#allocation2] sm:$0xff]
    %v76 = vld [vmem:[#allocation2 + $0x8] sm:$0xff]
    %v77 = vld [vmem:[#allocation2 + $0x10] sm:$0xff]
    %v78 = vld [vmem:[#allocation2 + $0x18] sm:$0xff]
    %v79 = vld [vmem:[#allocation2 + $0x20] sm:$0xff]
    %v80 = vld [vmem:[#allocation2 + $0x28] sm:$0xff]
    %v81 = vld [vmem:[#allocation2 + $0x30] sm:$0xff]
    %v82 = vld [vmem:[#allocation2 + $0x38] sm:$0xff]
    %v83 = vld [vmem:[#allocation2 + $0x40] sm:$0xff]
    %v84 = vld [vmem:[#allocation2 + $0x48] sm:$0xff]
    %v85 = vld [vmem:[#allocation2 + $0x50] sm:$0xff]
    %v86 = vld [vmem:[#allocation2 + $0x58] sm:$0xff]
    %v87 = vld [vmem:[#allocation2 + $0x60] sm:$0xff]
    %v88 = vld [vmem:[#allocation2 + $0x68] sm:$0xff]
    %v89 = vld [vmem:[#allocation2 + $0x70] sm:$0xff]
    %v90 = vld [vmem:[#allocation2 + $0x78] sm:$0xff]
    %v91 = vld [vmem:[%s2] sm:$0x1]
    %v93 = vlaneseq
    %v94 = vshrl.u32 %v93, 7
    %v95 = vsub.s32 0, %v94
    %v96 = vrot.slane %v91, %v95
    %98 = vmatprep.subr.mxu0 0.0
    %99 = vmatpush1.msra.mxu0 %v75
    %100 = vmatprep.subr.mxu0 0.0
    %101 = vmatpush1.msra.mxu0 %v76
    %102 = vmatprep.subr.mxu0 0.0
    %103 = vmatpush1.msra.mxu0 %v77
    %104 = vmatprep.subr.mxu0 0.0
    %105 = vmatpush1.msra.mxu0 %v78
    %106 = vmatprep.subr.mxu0 0.0
    %107 = vmatpush1.msra.mxu0 %v79
    %108 = vmatprep.subr.mxu0 0.0
    %109 = vmatpush1.msra.mxu0 %v80
    %110 = vmatprep.subr.mxu0 0.0
    %111 = vmatpush1.msra.mxu0 %v81
    %112 = vmatprep.subr.mxu0 0.0
    %113 = vmatpush1.msra.mxu0 %v82
    %114 = vmatprep.subr.mxu0 0.0
    %115 = vmatpush1.msra.mxu0 %v83
    %116 = vmatprep.subr.mxu0 0.0
    %117 = vmatpush1.msra.mxu0 %v84
    %118 = vmatprep.subr.mxu0 0.0
    %119 = vmatpush1.msra.mxu0 %v85
    %120 = vmatprep.subr.mxu0 0.0
    %121 = vmatpush1.msra.mxu0 %v86
    %122 = vmatprep.subr.mxu0 0.0
    %123 = vmatpush1.msra.mxu0 %v87
    %124 = vmatprep.subr.mxu0 0.0
    %125 = vmatpush1.msra.mxu0 %v88
    %126 = vmatprep.subr.mxu0 0.0
    %127 = vmatpush1.msra.mxu0 %v89
    %128 = vmatprep.subr.mxu0 0.0
    %129 = vmatpush1.msra.mxu0 %v90
    %130 = vmatprep.subr.mxu0 0.0
    %131 = vmatpush1.msra.mxu0 0.0
    %132 = vmatprep.subr.mxu0 0.0
    %133 = vmatpush1.msra.mxu0 0.0
    %134 = vmatprep.subr.mxu0 0.0
    %135 = vmatpush1.msra.mxu0 0.0
    %136 = vmatprep.subr.mxu0 0.0
    %137 = vmatpush1.msra.mxu0 0.0
    %138 = vmatprep.subr.mxu0 0.0
    %139 = vmatpush1.msra.mxu0 0.0
    %140 = vmatprep.subr.mxu0 0.0
    %141 = vmatpush1.msra.mxu0 0.0
    %142 = vmatprep.subr.mxu0 0.0
    %143 = vmatpush1.msra.mxu0 0.0
    %144 = vmatprep.subr.mxu0 0.0
    %145 = vmatpush1.msra.mxu0 0.0
    %146 = vmatprep.subr.mxu0 0.0
    %147 = vmatpush1.msra.mxu0 0.0
    %148 = vmatprep.subr.mxu0 0.0
    %149 = vmatpush1.msra.mxu0 0.0
    %150 = vmatprep.subr.mxu0 0.0
    %151 = vmatpush1.msra.mxu0 0.0
    %152 = vmatprep.subr.mxu0 0.0
    %153 = vmatpush1.msra.mxu0 0.0
    %154 = vmatprep.subr.mxu0 0.0
    %155 = vmatpush1.msra.mxu0 0.0
    %156 = vmatprep.subr.mxu0 0.0
    %157 = vmatpush1.msra.mxu0 0.0
    %158 = vmatprep.subr.mxu0 0.0
    %159 = vmatpush1.msra.mxu0 0.0
    %160 = vmatprep.subr.mxu0 0.0
    %161 = vmatpush1.msra.mxu0 0.0
    %162 = vmatprep.mubr.f32.mxu0 0.0
    %163 = vmatmul.mubr.f32.gmra.mrb[0].mxu0 %v67
    %v164 = vpop.f32.mrb[0].mxu0
    %v165 = vadd.f32 %v96, %v164
    %v166 = vpop.f32.mrb[0].mxu0
    %167 = vmatprep.mubr.f32.mxu0 0.0
    %168 = vmatmul.mubr.f32.gmra.mrb[0].mxu0 %v68
    %v169 = vpop.f32.mrb[0].mxu0
    %v170 = vadd.f32 %v96, %v169
    %v171 = vpop.f32.mrb[0].mxu0
    %172 = vmatprep.mubr.f32.mxu0 0.0
    %173 = vmatmul.mubr.f32.gmra.mrb[0].mxu0 %v69
    %v174 = vpop.f32.mrb[0].mxu0
    %v175 = vadd.f32 %v96, %v174
    %v176 = vpop.f32.mrb[0].mxu0
    %177 = vmatprep.mubr.f32.mxu0 0.0
    %178 = vmatmul.mubr.f32.gmra.mrb[0].mxu0 %v70
    %v179 = vpop.f32.mrb[0].mxu0
    %v180 = vadd.f32 %v96, %v179
    %v181 = vpop.f32.mrb[0].mxu0
    %182 = vmatprep.mubr.f32.mxu0 0.0
    %183 = vmatmul.mubr.f32.gmra.mrb[0].mxu0 %v71
    %v184 = vpop.f32.mrb[0].mxu0
    %v185 = vadd.f32 %v96, %v184
    %v186 = vpop.f32.mrb[0].mxu0
    %187 = vmatprep.mubr.f32.mxu0 0.0
    %188 = vmatmul.mubr.f32.gmra.mrb[0].mxu0 %v72
    %v189 = vpop.f32.mrb[0].mxu0
    %v190 = vadd.f32 %v96, %v189
    %v191 = vpop.f32.mrb[0].mxu0
    %192 = vmatprep.mubr.f32.mxu0 0.0
    %193 = vmatmul.mubr.f32.gmra.mrb[0].mxu0 %v73
    %v194 = vpop.f32.mrb[0].mxu0
    %v195 = vadd.f32 %v96, %v194
    %v196 = vpop.f32.mrb[0].mxu0
    %197 = vmatprep.mubr.f32.mxu0 0.0
    %198 = vmatmul.mubr.f32.gmra.mrb[0].mxu0 %v74
    %v199 = vpop.f32.mrb[0].mxu0
    %v200 = vadd.f32 %v96, %v199
    %v201 = vpop.f32.mrb[0].mxu0
    %202 = vdwg.mxu0
    %v203 = vmax.f32 %v165, 0.0
    %v204 = vmax.f32 %v170, 0.0
    %v205 = vmax.f32 %v175, 0.0
    %v206 = vmax.f32 %v180, 0.0
    %v207 = vmax.f32 %v185, 0.0
    %v208 = vmax.f32 %v190, 0.0
    %v209 = vmax.f32 %v195, 0.0
    %v210 = vmax.f32 %v200, 0.0
    %v211 = vld [vmem:[#allocation4] sm:$0xff]
    %v212 = vld [vmem:[#allocation4 + $0x8] sm:$0xff]
    %v213 = vld [vmem:[#allocation4 + $0x10] sm:$0xff]
    %v214 = vld [vmem:[#allocation4 + $0x18] sm:$0xff]
    %v215 = vld [vmem:[#allocation4 + $0x20] sm:$0xff]
    %v216 = vld [vmem:[#allocation4 + $0x28] sm:$0xff]
    %v217 = vld [vmem:[#allocation4 + $0x30] sm:$0xff]
    %v218 = vld [vmem:[#allocation4 + $0x38] sm:$0xff]
    %v219 = vld [vmem:[#allocation4 + $0x40] sm:$0xff]
    %v220 = vld [vmem:[#allocation4 + $0x48] sm:$0xff]
    %v221 = vld [vmem:[#allocation4 + $0x50] sm:$0xff]
    %v222 = vld [vmem:[#allocation4 + $0x58] sm:$0xff]
    %v223 = vld [vmem:[#allocation4 + $0x60] sm:$0xff]
    %v224 = vld [vmem:[#allocation4 + $0x68] sm:$0xff]
    %v225 = vld [vmem:[#allocation4 + $0x70] sm:$0xff]
    %v226 = vld [vmem:[#allocation4 + $0x78] sm:$0xff]
    %v227 = vld [vmem:[%s4] sm:$0x1]
    %v229 = vlaneseq
    %v230 = vshrl.u32 %v229, 7
    %v231 = vsub.s32 0, %v230
    %v232 = vrot.slane %v227, %v231
    %234 = vmatprep.subr.mxu0 0.0
    %235 = vmatpush1.msra.mxu0 %v211
    %236 = vmatprep.subr.mxu0 0.0
    %237 = vmatpush1.msra.mxu0 %v212
    %238 = vmatprep.subr.mxu0 0.0
    %239 = vmatpush1.msra.mxu0 %v213
    %240 = vmatprep.subr.mxu0 0.0
    %241 = vmatpush1.msra.mxu0 %v214
    %242 = vmatprep.subr.mxu0 0.0
    %243 = vmatpush1.msra.mxu0 %v215
    %244 = vmatprep.subr.mxu0 0.0
    %245 = vmatpush1.msra.mxu0 %v216
    %246 = vmatprep.subr.mxu0 0.0
    %247 = vmatpush1.msra.mxu0 %v217
    %248 = vmatprep.subr.mxu0 0.0
    %249 = vmatpush1.msra.mxu0 %v218
    %250 = vmatprep.subr.mxu0 0.0
    %251 = vmatpush1.msra.mxu0 %v219
    %252 = vmatprep.subr.mxu0 0.0
    %253 = vmatpush1.msra.mxu0 %v220
    %254 = vmatprep.subr.mxu0 0.0
    %255 = vmatpush1.msra.mxu0 %v221
    %256 = vmatprep.subr.mxu0 0.0
    %257 = vmatpush1.msra.mxu0 %v222
    %258 = vmatprep.subr.mxu0 0.0
    %259 = vmatpush1.msra.mxu0 %v223
    %260 = vmatprep.subr.mxu0 0.0
    %261 = vmatpush1.msra.mxu0 %v224
    %262 = vmatprep.subr.mxu0 0.0
    %263 = vmatpush1.msra.mxu0 %v225
    %264 = vmatprep.subr.mxu0 0.0
    %265 = vmatpush1.msra.mxu0 %v226
    %266 = vmatprep.subr.mxu0 0.0
    %267 = vmatpush1.msra.mxu0 0.0
    %268 = vmatprep.subr.mxu0 0.0
    %269 = vmatpush1.msra.mxu0 0.0
    %270 = vmatprep.subr.mxu0 0.0
    %271 = vmatpush1.msra.mxu0 0.0
    %272 = vmatprep.subr.mxu0 0.0
    %273 = vmatpush1.msra.mxu0 0.0
    %274 = vmatprep.subr.mxu0 0.0
    %275 = vmatpush1.msra.mxu0 0.0
    %276 = vmatprep.subr.mxu0 0.0
    %277 = vmatpush1.msra.mxu0 0.0
    %278 = vmatprep.subr.mxu0 0.0
    %279 = vmatpush1.msra.mxu0 0.0
    %280 = vmatprep.subr.mxu0 0.0
    %281 = vmatpush1.msra.mxu0 0.0
    %282 = vmatprep.subr.mxu0 0.0
    %283 = vmatpush1.msra.mxu0 0.0
    %284 = vmatprep.subr.mxu0 0.0
    %285 = vmatpush1.msra.mxu0 0.0
    %286 = vmatprep.subr.mxu0 0.0
    %287 = vmatpush1.msra.mxu0 0.0
    %288 = vmatprep.subr.mxu0 0.0
    %289 = vmatpush1.msra.mxu0 0.0
    %290 = vmatprep.subr.mxu0 0.0
    %291 = vmatpush1.msra.mxu0 0.0
    %292 = vmatprep.subr.mxu0 0.0
    %293 = vmatpush1.msra.mxu0 0.0
    %294 = vmatprep.subr.mxu0 0.0
    %295 = vmatpush1.msra.mxu0 0.0
    %296 = vmatprep.subr.mxu0 0.0
    %297 = vmatpush1.msra.mxu0 0.0
    %298 = vmatprep.mubr.f32.mxu0 0.0
    %299 = vmatmul.mubr.f32.gmra.mrb[0].mxu0 %v203
    %v300 = vpop.f32.mrb[0].mxu0
    %v301 = vadd.f32 %v232, %v300
    %v302 = vpop.f32.mrb[0].mxu0
    %303 = vmatprep.mubr.f32.mxu0 0.0
    %304 = vmatmul.mubr.f32.gmra.mrb[0].mxu0 %v204
    %v305 = vpop.f32.mrb[0].mxu0
    %v306 = vadd.f32 %v232, %v305
    %v307 = vpop.f32.mrb[0].mxu0
    %308 = vmatprep.mubr.f32.mxu0 0.0
    %309 = vmatmul.mubr.f32.gmra.mrb[0].mxu0 %v205
    %v310 = vpop.f32.mrb[0].mxu0
    %v311 = vadd.f32 %v232, %v310
    %v312 = vpop.f32.mrb[0].mxu0
    %313 = vmatprep.mubr.f32.mxu0 0.0
    %314 = vmatmul.mubr.f32.gmra.mrb[0].mxu0 %v206
    %v315 = vpop.f32.mrb[0].mxu0
    %v316 = vadd.f32 %v232, %v315
    %v317 = vpop.f32.mrb[0].mxu0
    %318 = vmatprep.mubr.f32.mxu0 0.0
    %319 = vmatmul.mubr.f32.gmra.mrb[0].mxu0 %v207
    %v320 = vpop.f32.mrb[0].mxu0
    %v321 = vadd.f32 %v232, %v320
    %v322 = vpop.f32.mrb[0].mxu0
    %323 = vmatprep.mubr.f32.mxu0 0.0
    %324 = vmatmul.mubr.f32.gmra.mrb[0].mxu0 %v208
    %v325 = vpop.f32.mrb[0].mxu0
    %v326 = vadd.f32 %v232, %v325
    %v327 = vpop.f32.mrb[0].mxu0
    %328 = vmatprep.mubr.f32.mxu0 0.0
    %329 = vmatmul.mubr.f32.gmra.mrb[0].mxu0 %v209
    %v330 = vpop.f32.mrb[0].mxu0
    %v331 = vadd.f32 %v232, %v330
    %v332 = vpop.f32.mrb[0].mxu0
    %333 = vmatprep.mubr.f32.mxu0 0.0
    %334 = vmatmul.mubr.f32.gmra.mrb[0].mxu0 %v210
    %v335 = vpop.f32.mrb[0].mxu0
    %v336 = vadd.f32 %v232, %v335
    %v337 = vpop.f32.mrb[0].mxu0
    %338 = vdwg.mxu0
    %v339 = vmax.f32 %v301, 0.0
    %v340 = vmax.f32 %v306, 0.0
    %v341 = vmax.f32 %v311, 0.0
    %v342 = vmax.f32 %v316, 0.0
    %v343 = vmax.f32 %v321, 0.0
    %v344 = vmax.f32 %v326, 0.0
    %v345 = vmax.f32 %v331, 0.0
    %v346 = vmax.f32 %v336, 0.0
    %v347 = vld [vmem:[#allocation6] sm:$0xff]
    %v348 = vld [vmem:[#allocation6 + $0x8] sm:$0xff]
    %v349 = vld [vmem:[#allocation6 + $0x10] sm:$0xff]
    %v350 = vld [vmem:[#allocation6 + $0x18] sm:$0xff]
    %v351 = vld [vmem:[#allocation6 + $0x20] sm:$0xff]
    %v352 = vld [vmem:[#allocation6 + $0x28] sm:$0xff]
    %v353 = vld [vmem:[#allocation6 + $0x30] sm:$0xff]
    %v354 = vld [vmem:[#allocation6 + $0x38] sm:$0xff]
    %v355 = vld [vmem:[#allocation6 + $0x40] sm:$0xff]
    %v356 = vld [vmem:[#allocation6 + $0x48] sm:$0xff]
    %v357 = vld [vmem:[#allocation6 + $0x50] sm:$0xff]
    %v358 = vld [vmem:[#allocation6 + $0x58] sm:$0xff]
    %v359 = vld [vmem:[#allocation6 + $0x60] sm:$0xff]
    %v360 = vld [vmem:[#allocation6 + $0x68] sm:$0xff]
    %v361 = vld [vmem:[#allocation6 + $0x70] sm:$0xff]
    %v362 = vld [vmem:[#allocation6 + $0x78] sm:$0xff]
    %v363 = vld [vmem:[%s6] sm:$0x1]
    %v365 = vlaneseq
    %v366 = vshrl.u32 %v365, 7
    %v367 = vsub.s32 0, %v366
    %v368 = vrot.slane %v363, %v367
    %370 = vmatprep.subr.mxu0 0.0
    %371 = vmatpush1.msra.mxu0 %v347
    %372 = vmatprep.subr.mxu0 0.0
    %373 = vmatpush1.msra.mxu0 %v348
    %374 = vmatprep.subr.mxu0 0.0
    %375 = vmatpush1.msra.mxu0 %v349
    %376 = vmatprep.subr.mxu0 0.0
    %377 = vmatpush1.msra.mxu0 %v350
    %378 = vmatprep.subr.mxu0 0.0
    %379 = vmatpush1.msra.mxu0 %v351
    %380 = vmatprep.subr.mxu0 0.0
    %381 = vmatpush1.msra.mxu0 %v352
    %382 = vmatprep.subr.mxu0 0.0
    %383 = vmatpush1.msra.mxu0 %v353
    %384 = vmatprep.subr.mxu0 0.0
    %385 = vmatpush1.msra.mxu0 %v354
    %386 = vmatprep.subr.mxu0 0.0
    %387 = vmatpush1.msra.mxu0 %v355
    %388 = vmatprep.subr.mxu0 0.0
    %389 = vmatpush1.msra.mxu0 %v356
    %390 = vmatprep.subr.mxu0 0.0
    %391 = vmatpush1.msra.mxu0 %v357
    %392 = vmatprep.subr.mxu0 0.0
    %393 = vmatpush1.msra.mxu0 %v358
    %394 = vmatprep.subr.mxu0 0.0
    %395 = vmatpush1.msra.mxu0 %v359
    %396 = vmatprep.subr.mxu0 0.0
    %397 = vmatpush1.msra.mxu0 %v360
    %398 = vmatprep.subr.mxu0 0.0
    %399 = vmatpush1.msra.mxu0 %v361
    %400 = vmatprep.subr.mxu0 0.0
    %401 = vmatpush1.msra.mxu0 %v362
    %402 = vmatprep.subr.mxu0 0.0
    %403 = vmatpush1.msra.mxu0 0.0
    %404 = vmatprep.subr.mxu0 0.0
    %405 = vmatpush1.msra.mxu0 0.0
    %406 = vmatprep.subr.mxu0 0.0
    %407 = vmatpush1.msra.mxu0 0.0
    %408 = vmatprep.subr.mxu0 0.0
    %409 = vmatpush1.msra.mxu0 0.0
    %410 = vmatprep.subr.mxu0 0.0
    %411 = vmatpush1.msra.mxu0 0.0
    %412 = vmatprep.subr.mxu0 0.0
    %413 = vmatpush1.msra.mxu0 0.0
    %414 = vmatprep.subr.mxu0 0.0
    %415 = vmatpush1.msra.mxu0 0.0
    %416 = vmatprep.subr.mxu0 0.0
    %417 = vmatpush1.msra.mxu0 0.0
    %418 = vmatprep.subr.mxu0 0.0
    %419 = vmatpush1.msra.mxu0 0.0
    %420 = vmatprep.subr.mxu0 0.0
    %421 = vmatpush1.msra.mxu0 0.0
    %422 = vmatprep.subr.mxu0 0.0
    %423 = vmatpush1.msra.mxu0 0.0
    %424 = vmatprep.subr.mxu0 0.0
    %425 = vmatpush1.msra.mxu0 0.0
    %426 = vmatprep.subr.mxu0 0.0
    %427 = vmatpush1.msra.mxu0 0.0
    %428 = vmatprep.subr.mxu0 0.0
    %429 = vmatpush1.msra.mxu0 0.0
    %430 = vmatprep.subr.mxu0 0.0
    %431 = vmatpush1.msra.mxu0 0.0
    %432 = vmatprep.subr.mxu0 0.0
    %433 = vmatpush1.msra.mxu0 0.0
    %434 = vmatprep.mubr.f32.mxu0 0.0
    %435 = vmatmul.mubr.f32.gmra.mrb[0].mxu0 %v339
    %v436 = vpop.f32.mrb[0].mxu0
    %v437 = vadd.f32 %v368, %v436
    %v438 = vpop.f32.mrb[0].mxu0
    %439 = vmatprep.mubr.f32.mxu0 0.0
    %440 = vmatmul.mubr.f32.gmra.mrb[0].mxu0 %v340
    %v441 = vpop.f32.mrb[0].mxu0
    %v442 = vadd.f32 %v368, %v441
    %v443 = vpop.f32.mrb[0].mxu0
    %444 = vmatprep.mubr.f32.mxu0 0.0
    %445 = vmatmul.mubr.f32.gmra.mrb[0].mxu0 %v341
    %v446 = vpop.f32.mrb[0].mxu0
    %v447 = vadd.f32 %v368, %v446
    %v448 = vpop.f32.mrb[0].mxu0
    %449 = vmatprep.mubr.f32.mxu0 0.0
    %450 = vmatmul.mubr.f32.gmra.mrb[0].mxu0 %v342
    %v451 = vpop.f32.mrb[0].mxu0
    %v452 = vadd.f32 %v368, %v451
    %v453 = vpop.f32.mrb[0].mxu0
    %454 = vmatprep.mubr.f32.mxu0 0.0
    %455 = vmatmul.mubr.f32.gmra.mrb[0].mxu0 %v343
    %v456 = vpop.f32.mrb[0].mxu0
    %v457 = vadd.f32 %v368, %v456
    %v458 = vpop.f32.mrb[0].mxu0
    %459 = vmatprep.mubr.f32.mxu0 0.0
    %460 = vmatmul.mubr.f32.gmra.mrb[0].mxu0 %v344
    %v461 = vpop.f32.mrb[0].mxu0
    %v462 = vadd.f32 %v368, %v461
    %v463 = vpop.f32.mrb[0].mxu0
    %464 = vmatprep.mubr.f32.mxu0 0.0
    %465 = vmatmul.mubr.f32.gmra.mrb[0].mxu0 %v345
    %v466 = vpop.f32.mrb[0].mxu0
    %v467 = vadd.f32 %v368, %v466
    %v468 = vpop.f32.mrb[0].mxu0
    %469 = vmatprep.mubr.f32.mxu0 0.0
    %470 = vmatmul.mubr.f32.gmra.mrb[0].mxu0 %v346
    %v471 = vpop.f32.mrb[0].mxu0
    %v472 = vadd.f32 %v368, %v471
    %v473 = vpop.f32.mrb[0].mxu0
    %474 = vdwg.mxu0
    %v475 = vmax.f32 %v437, 0.0
    %v476 = vmax.f32 %v442, 0.0
    %v477 = vmax.f32 %v447, 0.0
    %v478 = vmax.f32 %v452, 0.0
    %v479 = vmax.f32 %v457, 0.0
    %v480 = vmax.f32 %v462, 0.0
    %v481 = vmax.f32 %v467, 0.0
    %v482 = vmax.f32 %v472, 0.0
    %483 = vst [vmem:[%s7] sm:$0xff] %v475
    %484 = vst [vmem:[%s7 + $0x8] sm:$0xff] %v476
    %485 = vst [vmem:[%s7 + $0x10] sm:$0xff] %v477
    %486 = vst [vmem:[%s7 + $0x18] sm:$0xff] %v478
    %487 = vst [vmem:[%s7 + $0x20] sm:$0xff] %v479
    %488 = vst [vmem:[%s7 + $0x28] sm:$0xff] %v480
    %489 = vst [vmem:[%s7 + $0x30] sm:$0xff] %v481
    %490 = vst [vmem:[%s7 + $0x38] sm:$0xff] %v482
    // Predicated region
    $region42: #{rlu_forward.4} parent=1 // pred_check
      _
    $region43: #{rlu_forward.4} parent=1 // pred_check_branch
      %492 = sbr.rel (0) target = $region45
    $region44: #{rlu_forward.4} parent=1 // pred_region
      _
    $region45: #{rlu_forward.4} parent=1 // pred_fallthru
      _
    // Predicated region
    $region46: #{rlu_forward.4} parent=1 // pred_check
      _
    $region47: #{rlu_forward.4} parent=1 // pred_check_branch
      %494 = sbr.rel (0) target = $region49
    $region48: #{rlu_forward.4} parent=1 // pred_region
      _
    $region49: #{rlu_forward.4} parent=1 // pred_fallthru
      _
    %495 = vsyncpa [#allocation3], 1
    %496 = vsyncpa [#allocation5], 1

// kernel: rlu_forward.5
$region0: #{rlu_forward.5}
  #allocation0 [shape = 'u32[]', space=smem, size = 0x4, offset = 0x4, fixed_abs, tag = 'smem constant byte address 0x4 - core index']
  #allocation1 [shape = 'u32[144,128]{1,0:T(1,128)}', space=vmem, size = 0x12000, scoped, tag = 'internal scratch']
  #allocation2 [shape = 'f32[8,128]{1,0:T(8,128)}', space=vmem, size = 0x1000, scoped, tag = 'scratch operand']
  #allocation3 [shape = 'f32[8,128]{1,0:T(8,128)}', space=vmem, size = 0x1000, scoped, tag = 'scratch operand']
  %s0 = inlined_call_operand.vmem [shape: f32[8,8,128], index: 0, kind: input, shape index: {}]
  %s1 = inlined_call_operand.vmem [shape: f32[128,512], index: 1, kind: input, shape index: {}]
  %s2 = inlined_call_operand.hbm [shape: f32[128,512], index: 2, kind: input, shape index: {}]
  %s3 = inlined_call_operand.vmem [shape: f32[1,512], index: 3, kind: input, shape index: {}]
  %s4 = inlined_call_operand.vmem [shape: f32[8,8,128], index: 4, kind: output, shape index: {}]
  %s5 = sld [smem:[#allocation0]]
  $region57: #{rlu_forward.5} parent=0
    _
  %s7 = ssub.s32 1, %s5
  %s8 = scalar_select 0, %s7, %s5
  $region1: #{rlu_forward.5} parent=0
    #allocation4 [shape = 'u8[262144]{0}', space=vmem, size = 0x40000, scoped, tag = 'input window, operand 2, single buffered']
    #allocation5 [shape = 's32[2]{0}', space=sflag, size = 0x8, scoped, tag = 'scoped memory for rlu_forward.5']
    %9 = vsyncpa [#allocation5], 0
    loop: start=0, step=1, limit=10
    $region2: #{rlu_forward.5} parent=1 // loop_pre_header
      _
    $region3: #{rlu_forward.5} parent=1 // loop_header
      %s11 = sphi 0, %s15
      %p12 = scmp.ge.s32.totalorder %s11, 10
      %s21 = sphi 0, %s23
      %s24 = sphi 0, %s21
      %s25 = sphi 0, %s24
      %s41 = sphi 0, %s25
      %s45 = sphi 0, %s45
      %s47 = sphi 0, %s45
      %s48 = sphi 0, %s47
      %s62 = sphi 0, %s48
      %s66 = sphi 0, %s66
      %s68 = sphi 0, %s66
      %s69 = sphi 0, %s68
      %s83 = sphi 0, %s69
      %s87 = sphi 0, %s87
      %s89 = sphi 0, %s87
      %s90 = sphi 0, %s89
      %s104 = sphi 0, %s90
      %s110 = sphi 0, %s112
      %s113 = sphi 0, %s110
      %s114 = sphi 0, %s113
      %s130 = sphi 0, %s114
    $region4: #{rlu_forward.5} parent=1 // loop_header_branch
      %14 = sbr.rel (%p12) target = $region8
    $region5: #{rlu_forward.5} parent=1 // loop_body
      %s16 = ssub.s32 %s11, 1
      %s17 = ssub.s32 %s11, 2
      %s18 = sadd.s32 %s11, 1
      %s19 = ssub.s32 %s11, %s18
      %p20 = scmp.eq.s32.totalorder %s19, 0
      %s22 = sadd.s32 %s21, 1
      %s23 = scalar_select %p20, %s21, %s22
      %p26 = pneg %p20
      %p27 = scmp.eq.s32.totalorder %s11, 7
      %p28 = por %p26, %p27
      %p29 = scmp.ne.s32.totalorder %s21, %s24
      %p30 = scmp.eq.s32.totalorder %s11, 0
      %p31 = por %p29, %p30
      %p32 = scmp.ne.s32.totalorder %s21, %s24
      %p33 = scmp.eq.s32.totalorder %s16, 7
      %p34 = por %p32, %p33
      %p35 = scmp.ne.s32.totalorder %s24, %s25
      %p36 = scmp.eq.s32.totalorder %s16, 0
      %p37 = por %p35, %p36
      %p38 = scmp.ne.s32.totalorder %s24, %s25
      %p39 = scmp.eq.s32.totalorder %s17, 7
      %p40 = por %p38, %p39
      %p42 = scmp.ne.s32.totalorder %s25, %s41
      %p43 = scmp.eq.s32.totalorder %s17, 0
      %p44 = por %p42, %p43
      %s46 = sadd.s32 %s45, 1
      %p49 = scmp.eq.s32.totalorder %s11, 7
      %p50 = scmp.ne.s32.totalorder %s45, %s47
      %p51 = scmp.eq.s32.totalorder %s11, 0
      %p52 = por %p50, %p51
      %p53 = scmp.ne.s32.totalorder %s45, %s47
      %p54 = scmp.eq.s32.totalorder %s16, 7
      %p55 = por %p53, %p54
      %p56 = scmp.ne.s32.totalorder %s47, %s48
      %p57 = scmp.eq.s32.totalorder %s16, 0
      %p58 = por %p56, %p57
      %p59 = scmp.ne.s32.totalorder %s47, %s48
      %p60 = scmp.eq.s32.totalorder %s17, 7
      %p61 = por %p59, %p60
      %p63 = scmp.ne.s32.totalorder %s48, %s62
      %p64 = scmp.eq.s32.totalorder %s17, 0
      %p65 = por %p63, %p64
      %s67 = sadd.s32 %s66, 1
      %p70 = scmp.eq.s32.totalorder %s11, 7
      %p71 = scmp.ne.s32.totalorder %s66, %s68
      %p72 = scmp.eq.s32.totalorder %s11, 0
      %p73 = por %p71, %p72
      %p74 = scmp.ne.s32.totalorder %s66, %s68
      %p75 = scmp.eq.s32.totalorder %s16, 7
      %p76 = por %p74, %p75
      %p77 = scmp.ne.s32.totalorder %s68, %s69
      %p78 = scmp.eq.s32.totalorder %s16, 0
      %p79 = por %p77, %p78
      %p80 = scmp.ne.s32.totalorder %s68, %s69
      %p81 = scmp.eq.s32.totalorder %s17, 7
      %p82 = por %p80, %p81
      %p84 = scmp.ne.s32.totalorder %s69, %s83
      %p85 = scmp.eq.s32.totalorder %s17, 0
      %p86 = por %p84, %p85
      %s88 = sadd.s32 %s87, 1
      %p91 = scmp.eq.s32.totalorder %s11, 7
      %p92 = scmp.ne.s32.totalorder %s87, %s89
      %p93 = scmp.eq.s32.totalorder %s11, 0
      %p94 = por %p92, %p93
      %p95 = scmp.ne.s32.totalorder %s87, %s89
      %p96 = scmp.eq.s32.totalorder %s16, 7
      %p97 = por %p95, %p96
      %p98 = scmp.ne.s32.totalorder %s89, %s90
      %p99 = scmp.eq.s32.totalorder %s16, 0
      %p100 = por %p98, %p99
      %p101 = scmp.ne.s32.totalorder %s89, %s90
      %p102 = scmp.eq.s32.totalorder %s17, 7
      %p103 = por %p101, %p102
      %p105 = scmp.ne.s32.totalorder %s90, %s104
      %p106 = scmp.eq.s32.totalorder %s17, 0
      %p107 = por %p105, %p106
      %s108 = ssub.s32 %s11, %s18
      %p109 = scmp.eq.s32.totalorder %s108, 0
      %s111 = sadd.s32 %s110, 1
      %s112 = scalar_select %p109, %s110, %s111
      %p115 = pneg %p109
      %p116 = scmp.eq.s32.totalorder %s11, 7
      %p117 = por %p115, %p116
      %p118 = scmp.ne.s32.totalorder %s110, %s113
      %p119 = scmp.eq.s32.totalorder %s11, 0
      %p120 = por %p118, %p119
      %p121 = scmp.ne.s32.totalorder %s110, %s113
      %p122 = scmp.eq.s32.totalorder %s16, 7
      %p123 = por %p121, %p122
      %p124 = scmp.ne.s32.totalorder %s113, %s114
      %p125 = scmp.eq.s32.totalorder %s16, 0
      %p126 = por %p124, %p125
      %p127 = scmp.ne.s32.totalorder %s113, %s114
      %p128 = scmp.eq.s32.totalorder %s17, 7
      %p129 = por %p127, %p128
      %p131 = scmp.ne.s32.totalorder %s114, %s130
      %p132 = scmp.eq.s32.totalorder %s17, 0
      %p133 = por %p131, %p132
      %p134 = scmp.le.s32.totalorder 1, %s11
      %p135 = scmp.lt.s32.totalorder %s11, 9
      %p136 = pnand %p134, %p135
      %p137 = pneg %p136
      // Predicated region
      $region9: #{rlu_forward.5} parent=5 // pred_check
        _
      $region10: #{rlu_forward.5} parent=5 // pred_check_branch
        %139 = sbr.rel (%p136) target = $region12
      $region11: #{rlu_forward.5} parent=5 // pred_region
        %s140 = ssub.s32 %s11, 1
        // Predicated region
        $region13: #{rlu_forward.5} parent=11 // pred_check
          %p141 = pneg %p58
        $region14: #{rlu_forward.5} parent=11 // pred_check_branch
          %143 = sbr.rel (%p141) target = $region16
        $region15: #{rlu_forward.5} parent=11 // pred_region
          _
        $region16: #{rlu_forward.5} parent=11 // pred_fallthru
          _
        // Predicated region
        $region17: #{rlu_forward.5} parent=11 // pred_check
          %p144 = pneg %p79
        $region18: #{rlu_forward.5} parent=11 // pred_check_branch
          %146 = sbr.rel (%p144) target = $region20
        $region19: #{rlu_forward.5} parent=11 // pred_region
          %s148 = ssub.s32 8192, 8192
          %149 = vsyncadd [#allocation5], %s148
          %s150 = sshll.u32 [#allocation4], 4
          %s151 = int_to_ptr.vmem [resolvable:$true] %s150
          %156 = dma.hbm_to_vmem [thread:$0]  %s2, 8192, %s151, [#allocation5], 512, 512, 32
        $region20: #{rlu_forward.5} parent=11 // pred_fallthru
          _
        // Predicated region
        $region21: #{rlu_forward.5} parent=11 // pred_check
          %p157 = pneg %p100
        $region22: #{rlu_forward.5} parent=11 // pred_check_branch
          %159 = sbr.rel (%p157) target = $region24
        $region23: #{rlu_forward.5} parent=11 // pred_region
          _
        $region24: #{rlu_forward.5} parent=11 // pred_fallthru
          _
      $region12: #{rlu_forward.5} parent=5 // pred_fallthru
        _
      %p160 = scmp.lt.s32.totalorder %s11, 8
      // Predicated region
      $region25: #{rlu_forward.5} parent=5 // pred_check
        %p161 = pneg %p160
      $region26: #{rlu_forward.5} parent=5 // pred_check_branch
        %163 = sbr.rel (%p161) target = $region28
      $region27: #{rlu_forward.5} parent=5 // pred_region
        // Predicated region
        $region29: #{rlu_forward.5} parent=27 // pred_check
          %p164 = pneg %p31
        $region30: #{rlu_forward.5} parent=27 // pred_check_branch
          %166 = sbr.rel (%p164) target = $region32
        $region31: #{rlu_forward.5} parent=27 // pred_region
          %p167 = scmp.lt.s32.totalorder %s11, 7
          %s168 = scalar_select %p167, %s11, 7
          %s169 = smul.addr %s168, 8
          %s170 = scalar_lea.vmem %s0, %s169
        $region32: #{rlu_forward.5} parent=27 // pred_fallthru
          _
      $region28: #{rlu_forward.5} parent=5 // pred_fallthru
        _
      %p171 = scmp.le.s32.totalorder 1, %s11
      %p172 = scmp.lt.s32.totalorder %s11, 9
      %p173 = pnand %p171, %p172
      %p174 = pneg %p173
      // Predicated region
      $region33: #{rlu_forward.5} parent=5 // pred_check
        _
      $region34: #{rlu_forward.5} parent=5 // pred_check_branch
        %176 = sbr.rel (%p173) target = $region36
      $region35: #{rlu_forward.5} parent=5 // pred_region
        %s177 = ssub.s32 %s11, 1
        // Predicated region
        $region37: #{rlu_forward.5} parent=35 // pred_check
          %p178 = pneg %p79
        $region38: #{rlu_forward.5} parent=35 // pred_check_branch
          %180 = sbr.rel (%p178) target = $region40
        $region39: #{rlu_forward.5} parent=35 // pred_region
          %181 = dma.done [#allocation5], 8192
        $region40: #{rlu_forward.5} parent=35 // pred_fallthru
          _
        %p182 = scmp.lt.s32.totalorder %s16, 7
        %s183 = scalar_select %p182, %s16, 7
        %s184 = smul.addr %s183, 8
        %s185 = scalar_lea.vmem %s0, %s184
        %p186 = pneg %p37
        %p187 = pneg %p34
        %p188 = pneg %p58
        %p189 = pneg %p55
        %p190 = pneg %p79
        %p191 = pneg %p76
        %p192 = pneg %p100
        %p193 = pneg %p97
        %p194 = pneg %p126
        %p195 = pneg %p123
        %p196 = scmp.lt.s32.totalorder %s16, 7
        %s197 = scalar_select %p196, %s16, 7
        %s198 = smul.addr %s197, 8
        %s199 = scalar_lea.vmem %s4, %s198
        %p200 = scmp.lt.s32.totalorder %s16, 7
        %s201 = scalar_select %p200, %s16, 7
        %s202 = smul.addr %s201, 8
        %s203 = scalar_lea.vmem %s0, %s202
        %p204 = scmp.lt.s32.totalorder %s16, 7
        %s205 = scalar_select %p204, %s16, 7
        %s206 = smul.addr %s205, 8
        %s207 = scalar_lea.vmem %s4, %s206
        %p208 = scmp.eq.s32.totalorder %s16, 0
        // Predicated region
        $region41: #{rlu_forward.5} parent=35 // pred_check
          %p209 = pneg %p208
        $region42: #{rlu_forward.5} parent=35 // pred_check_branch
          %211 = sbr.rel (%p209) target = $region44
        $region43: #{rlu_forward.5} parent=35 // pred_region
          %212 = vst [vmem:[#allocation2] sm:$0xff] 0.0
          %213 = vst [vmem:[#allocation3] sm:$0xff] 0.0
        $region44: #{rlu_forward.5} parent=35 // pred_fallthru
          _
        %v214 = vld [vmem:[%s203] sm:$0xff]
        %v215 = vld [vmem:[%s1] sm:$0xff]
        %v216 = vld [vmem:[%s1 + $0x8] sm:$0xff]
        %v217 = vld [vmem:[%s1 + $0x10] sm:$0xff]
        %v218 = vld [vmem:[%s1 + $0x18] sm:$0xff]
        %v219 = vld [vmem:[%s1 + $0x20] sm:$0xff]
        %v220 = vld [vmem:[%s1 + $0x28] sm:$0xff]
        %v221 = vld [vmem:[%s1 + $0x30] sm:$0xff]
        %v222 = vld [vmem:[%s1 + $0x38] sm:$0xff]
        %v223 = vld [vmem:[%s1 + $0x40] sm:$0xff]
        %v224 = vld [vmem:[%s1 + $0x48] sm:$0xff]
        %v225 = vld [vmem:[%s1 + $0x50] sm:$0xff]
        %v226 = vld [vmem:[%s1 + $0x58] sm:$0xff]
        %v227 = vld [vmem:[%s1 + $0x60] sm:$0xff]
        %v228 = vld [vmem:[%s1 + $0x68] sm:$0xff]
        %v229 = vld [vmem:[%s1 + $0x70] sm:$0xff]
        %v230 = vld [vmem:[%s1 + $0x78] sm:$0xff]
        %v231 = vld [vmem:[%s1 + $0x80] sm:$0xff]
        %v232 = vld [vmem:[%s1 + $0x88] sm:$0xff]
        %v233 = vld [vmem:[%s1 + $0x90] sm:$0xff]
        %v234 = vld [vmem:[%s1 + $0x98] sm:$0xff]
        %v235 = vld [vmem:[%s1 + $0xa0] sm:$0xff]
        %v236 = vld [vmem:[%s1 + $0xa8] sm:$0xff]
        %v237 = vld [vmem:[%s1 + $0xb0] sm:$0xff]
        %v238 = vld [vmem:[%s1 + $0xb8] sm:$0xff]
        %v239 = vld [vmem:[%s1 + $0xc0] sm:$0xff]
        %v240 = vld [vmem:[%s1 + $0xc8] sm:$0xff]
        %v241 = vld [vmem:[%s1 + $0xd0] sm:$0xff]
        %v242 = vld [vmem:[%s1 + $0xd8] sm:$0xff]
        %v243 = vld [vmem:[%s1 + $0xe0] sm:$0xff]
        %v244 = vld [vmem:[%s1 + $0xe8] sm:$0xff]
        %v245 = vld [vmem:[%s1 + $0xf0] sm:$0xff]
        %v246 = vld [vmem:[%s1 + $0xf8] sm:$0xff]
        %v247 = vld [vmem:[%s1 + $0x100] sm:$0xff]
        %v248 = vld [vmem:[%s1 + $0x108] sm:$0xff]
        %v249 = vld [vmem:[%s1 + $0x110] sm:$0xff]
        %v250 = vld [vmem:[%s1 + $0x118] sm:$0xff]
        %v251 = vld [vmem:[%s1 + $0x120] sm:$0xff]
        %v252 = vld [vmem:[%s1 + $0x128] sm:$0xff]
        %v253 = vld [vmem:[%s1 + $0x130] sm:$0xff]
        %v254 = vld [vmem:[%s1 + $0x138] sm:$0xff]
        %v255 = vld [vmem:[%s1 + $0x140] sm:$0xff]
        %v256 = vld [vmem:[%s1 + $0x148] sm:$0xff]
        %v257 = vld [vmem:[%s1 + $0x150] sm:$0xff]
        %v258 = vld [vmem:[%s1 + $0x158] sm:$0xff]
        %v259 = vld [vmem:[%s1 + $0x160] sm:$0xff]
        %v260 = vld [vmem:[%s1 + $0x168] sm:$0xff]
        %v261 = vld [vmem:[%s1 + $0x170] sm:$0xff]
        %v262 = vld [vmem:[%s1 + $0x178] sm:$0xff]
        %v263 = vld [vmem:[%s1 + $0x180] sm:$0xff]
        %v264 = vld [vmem:[%s1 + $0x188] sm:$0xff]
        %v265 = vld [vmem:[%s1 + $0x190] sm:$0xff]
        %v266 = vld [vmem:[%s1 + $0x198] sm:$0xff]
        %v267 = vld [vmem:[%s1 + $0x1a0] sm:$0xff]
        %v268 = vld [vmem:[%s1 + $0x1a8] sm:$0xff]
        %v269 = vld [vmem:[%s1 + $0x1b0] sm:$0xff]
        %v270 = vld [vmem:[%s1 + $0x1b8] sm:$0xff]
        %v271 = vld [vmem:[%s1 + $0x1c0] sm:$0xff]
        %v272 = vld [vmem:[%s1 + $0x1c8] sm:$0xff]
        %v273 = vld [vmem:[%s1 + $0x1d0] sm:$0xff]
        %v274 = vld [vmem:[%s1 + $0x1d8] sm:$0xff]
        %v275 = vld [vmem:[%s1 + $0x1e0] sm:$0xff]
        %v276 = vld [vmem:[%s1 + $0x1e8] sm:$0xff]
        %v277 = vld [vmem:[%s1 + $0x1f0] sm:$0xff]
        %v278 = vld [vmem:[%s1 + $0x1f8] sm:$0xff]
        %v279 = vld [vmem:[#allocation2] sm:$0xff]
        %v280 = vld [vmem:[#allocation4] sm:$0xff]
        %v281 = vld [vmem:[#allocation4 + $0x8] sm:$0xff]
        %v282 = vld [vmem:[#allocation4 + $0x10] sm:$0xff]
        %v283 = vld [vmem:[#allocation4 + $0x18] sm:$0xff]
        %v284 = vld [vmem:[#allocation4 + $0x20] sm:$0xff]
        %v285 = vld [vmem:[#allocation4 + $0x28] sm:$0xff]
        %v286 = vld [vmem:[#allocation4 + $0x30] sm:$0xff]
        %v287 = vld [vmem:[#allocation4 + $0x38] sm:$0xff]
        %v288 = vld [vmem:[#allocation4 + $0x40] sm:$0xff]
        %v289 = vld [vmem:[#allocation4 + $0x48] sm:$0xff]
        %v290 = vld [vmem:[#allocation4 + $0x50] sm:$0xff]
        %v291 = vld [vmem:[#allocation4 + $0x58] sm:$0xff]
        %v292 = vld [vmem:[#allocation4 + $0x60] sm:$0xff]
        %v293 = vld [vmem:[#allocation4 + $0x68] sm:$0xff]
        %v294 = vld [vmem:[#allocation4 + $0x70] sm:$0xff]
        %v295 = vld [vmem:[#allocation4 + $0x78] sm:$0xff]
        %v296 = vld [vmem:[#allocation4 + $0x80] sm:$0xff]
        %v297 = vld [vmem:[#allocation4 + $0x88] sm:$0xff]
        %v298 = vld [vmem:[#allocation4 + $0x90] sm:$0xff]
        %v299 = vld [vmem:[#allocation4 + $0x98] sm:$0xff]
        %v300 = vld [vmem:[#allocation4 + $0xa0] sm:$0xff]
        %v301 = vld [vmem:[#allocation4 + $0xa8] sm:$0xff]
        %v302 = vld [vmem:[#allocation4 + $0xb0] sm:$0xff]
        %v303 = vld [vmem:[#allocation4 + $0xb8] sm:$0xff]
        %v304 = vld [vmem:[#allocation4 + $0xc0] sm:$0xff]
        %v305 = vld [vmem:[#allocation4 + $0xc8] sm:$0xff]
        %v306 = vld [vmem:[#allocation4 + $0xd0] sm:$0xff]
        %v307 = vld [vmem:[#allocation4 + $0xd8] sm:$0xff]
        %v308 = vld [vmem:[#allocation4 + $0xe0] sm:$0xff]
        %v309 = vld [vmem:[#allocation4 + $0xe8] sm:$0xff]
        %v310 = vld [vmem:[#allocation4 + $0xf0] sm:$0xff]
        %v311 = vld [vmem:[#allocation4 + $0xf8] sm:$0xff]
        %v312 = vld [vmem:[#allocation4 + $0x100] sm:$0xff]
        %v313 = vld [vmem:[#allocation4 + $0x108] sm:$0xff]
        %v314 = vld [vmem:[#allocation4 + $0x110] sm:$0xff]
        %v315 = vld [vmem:[#allocation4 + $0x118] sm:$0xff]
        %v316 = vld [vmem:[#allocation4 + $0x120] sm:$0xff]
        %v317 = vld [vmem:[#allocation4 + $0x128] sm:$0xff]
        %v318 = vld [vmem:[#allocation4 + $0x130] sm:$0xff]
        %v319 = vld [vmem:[#allocation4 + $0x138] sm:$0xff]
        %v320 = vld [vmem:[#allocation4 + $0x140] sm:$0xff]
        %v321 = vld [vmem:[#allocation4 + $0x148] sm:$0xff]
        %v322 = vld [vmem:[#allocation4 + $0x150] sm:$0xff]
        %v323 = vld [vmem:[#allocation4 + $0x158] sm:$0xff]
        %v324 = vld [vmem:[#allocation4 + $0x160] sm:$0xff]
        %v325 = vld [vmem:[#allocation4 + $0x168] sm:$0xff]
        %v326 = vld [vmem:[#allocation4 + $0x170] sm:$0xff]
        %v327 = vld [vmem:[#allocation4 + $0x178] sm:$0xff]
        %v328 = vld [vmem:[#allocation4 + $0x180] sm:$0xff]
        %v329 = vld [vmem:[#allocation4 + $0x188] sm:$0xff]
        %v330 = vld [vmem:[#allocation4 + $0x190] sm:$0xff]
        %v331 = vld [vmem:[#allocation4 + $0x198] sm:$0xff]
        %v332 = vld [vmem:[#allocation4 + $0x1a0] sm:$0xff]
        %v333 = vld [vmem:[#allocation4 + $0x1a8] sm:$0xff]
        %v334 = vld [vmem:[#allocation4 + $0x1b0] sm:$0xff]
        %v335 = vld [vmem:[#allocation4 + $0x1b8] sm:$0xff]
        %v336 = vld [vmem:[#allocation4 + $0x1c0] sm:$0xff]
        %v337 = vld [vmem:[#allocation4 + $0x1c8] sm:$0xff]
        %v338 = vld [vmem:[#allocation4 + $0x1d0] sm:$0xff]
        %v339 = vld [vmem:[#allocation4 + $0x1d8] sm:$0xff]
        %v340 = vld [vmem:[#allocation4 + $0x1e0] sm:$0xff]
        %v341 = vld [vmem:[#allocation4 + $0x1e8] sm:$0xff]
        %v342 = vld [vmem:[#allocation4 + $0x1f0] sm:$0xff]
        %v343 = vld [vmem:[#allocation4 + $0x1f8] sm:$0xff]
        %344 = vmatprep.subr.mxu0 %v281
        %345 = vmatpush1.msra.mxu0 %v280
        %346 = vmatprep.subr.mxu0 %v285
        %347 = vmatpush1.msra.mxu0 %v284
        %348 = vmatprep.subr.mxu0 %v289
        %349 = vmatpush1.msra.mxu0 %v288
        %350 = vmatprep.subr.mxu0 %v293
        %351 = vmatpush1.msra.mxu0 %v292
        %352 = vmatprep.subr.mxu0 %v297
        %353 = vmatpush1.msra.mxu0 %v296
        %354 = vmatprep.subr.mxu0 %v301
        %355 = vmatpush1.msra.mxu0 %v300
        %356 = vmatprep.subr.mxu0 %v305
        %357 = vmatpush1.msra.mxu0 %v304
        %358 = vmatprep.subr.mxu0 %v309
        %359 = vmatpush1.msra.mxu0 %v308
        %360 = vmatprep.subr.mxu0 %v313
        %361 = vmatpush1.msra.mxu0 %v312
        %362 = vmatprep.subr.mxu0 %v317
        %363 = vmatpush1.msra.mxu0 %v316
        %364 = vmatprep.subr.mxu0 %v321
        %365 = vmatpush1.msra.mxu0 %v320
        %366 = vmatprep.subr.mxu0 %v325
        %367 = vmatpush1.msra.mxu0 %v324
        %368 = vmatprep.subr.mxu0 %v329
        %369 = vmatpush1.msra.mxu0 %v328
        %370 = vmatprep.subr.mxu0 %v333
        %371 = vmatpush1.msra.mxu0 %v332
        %372 = vmatprep.subr.mxu0 %v337
        %373 = vmatpush1.msra.mxu0 %v336
        %374 = vmatprep.subr.mxu0 %v341
        %375 = vmatpush1.msra.mxu0 %v340
        %376 = vmatprep.subr.mxu0 0.0
        %377 = vmatpush1.msra.mxu0 0.0
        %378 = vmatprep.subr.mxu0 0.0
        %379 = vmatpush1.msra.mxu0 0.0
        %380 = vmatprep.subr.mxu0 0.0
        %381 = vmatpush1.msra.mxu0 0.0
        %382 = vmatprep.subr.mxu0 0.0
        %383 = vmatpush1.msra.mxu0 0.0
        %384 = vmatprep.subr.mxu0 0.0
        %385 = vmatpush1.msra.mxu0 0.0
        %386 = vmatprep.subr.mxu0 0.0
        %387 = vmatpush1.msra.mxu0 0.0
        %388 = vmatprep.subr.mxu0 0.0
        %389 = vmatpush1.msra.mxu0 0.0
        %390 = vmatprep.subr.mxu0 0.0
        %391 = vmatpush1.msra.mxu0 0.0
        %392 = vmatprep.subr.mxu0 0.0
        %393 = vmatpush1.msra.mxu0 0.0
        %394 = vmatprep.subr.mxu0 0.0
        %395 = vmatpush1.msra.mxu0 0.0
        %396 = vmatprep.subr.mxu0 0.0
        %397 = vmatpush1.msra.mxu0 0.0
        %398 = vmatprep.subr.mxu0 0.0
        %399 = vmatpush1.msra.mxu0 0.0
        %400 = vmatprep.subr.mxu0 0.0
        %401 = vmatpush1.msra.mxu0 0.0
        %402 = vmatprep.subr.mxu0 0.0
        %403 = vmatpush1.msra.mxu0 0.0
        %404 = vmatprep.subr.mxu0 0.0
        %405 = vmatpush1.msra.mxu0 0.0
        %406 = vmatprep.subr.mxu0 0.0
        %407 = vmatpush1.msra.mxu0 0.0
        %408 = vmatprep.mubr.f32.mxu0 0.0
        %409 = vmatmul.mubr.f32.gmra.mrb[0].mxu0 %v279
        %v410 = vpop.f32.mrb[0].mxu0
        %v411 = vadd.f32 0.0, %v410
        %v412 = vpop.f32.mrb[0].mxu0
        %v413 = vadd.f32 0.0, %v412
        %414 = vdwg.mxu0
        %415 = vmatprep.subr.mxu0 %v283
        %416 = vmatpush1.msra.mxu0 %v282
        %417 = vmatprep.subr.mxu0 %v287
        %418 = vmatpush1.msra.mxu0 %v286
        %419 = vmatprep.subr.mxu0 %v291
        %420 = vmatpush1.msra.mxu0 %v290
        %421 = vmatprep.subr.mxu0 %v295
        %422 = vmatpush1.msra.mxu0 %v294
        %423 = vmatprep.subr.mxu0 %v299
        %424 = vmatpush1.msra.mxu0 %v298
        %425 = vmatprep.subr.mxu0 %v303
        %426 = vmatpush1.msra.mxu0 %v302
        %427 = vmatprep.subr.mxu0 %v307
        %428 = vmatpush1.msra.mxu0 %v306
        %429 = vmatprep.subr.mxu0 %v311
        %430 = vmatpush1.msra.mxu0 %v310
        %431 = vmatprep.subr.mxu0 %v315
        %432 = vmatpush1.msra.mxu0 %v314
        %433 = vmatprep.subr.mxu0 %v319
        %434 = vmatpush1.msra.mxu0 %v318
        %435 = vmatprep.subr.mxu0 %v323
        %436 = vmatpush1.msra.mxu0 %v322
        %437 = vmatprep.subr.mxu0 %v327
        %438 = vmatpush1.msra.mxu0 %v326
        %439 = vmatprep.subr.mxu0 %v331
        %440 = vmatpush1.msra.mxu0 %v330
        %441 = vmatprep.subr.mxu0 %v335
        %442 = vmatpush1.msra.mxu0 %v334
        %443 = vmatprep.subr.mxu0 %v339
        %444 = vmatpush1.msra.mxu0 %v338
        %445 = vmatprep.subr.mxu0 %v343
        %446 = vmatpush1.msra.mxu0 %v342
        %447 = vmatprep.subr.mxu0 0.0
        %448 = vmatpush1.msra.mxu0 0.0
        %449 = vmatprep.subr.mxu0 0.0
        %450 = vmatpush1.msra.mxu0 0.0
        %451 = vmatprep.subr.mxu0 0.0
        %452 = vmatpush1.msra.mxu0 0.0
        %453 = vmatprep.subr.mxu0 0.0
        %454 = vmatpush1.msra.mxu0 0.0
        %455 = vmatprep.subr.mxu0 0.0
        %456 = vmatpush1.msra.mxu0 0.0
        %457 = vmatprep.subr.mxu0 0.0
        %458 = vmatpush1.msra.mxu0 0.0
        %459 = vmatprep.subr.mxu0 0.0
        %460 = vmatpush1.msra.mxu0 0.0
        %461 = vmatprep.subr.mxu0 0.0
        %462 = vmatpush1.msra.mxu0 0.0
        %463 = vmatprep.subr.mxu0 0.0
        %464 = vmatpush1.msra.mxu0 0.0
        %465 = vmatprep.subr.mxu0 0.0
        %466 = vmatpush1.msra.mxu0 0.0
        %467 = vmatprep.subr.mxu0 0.0
        %468 = vmatpush1.msra.mxu0 0.0
        %469 = vmatprep.subr.mxu0 0.0
        %470 = vmatpush1.msra.mxu0 0.0
        %471 = vmatprep.subr.mxu0 0.0
        %472 = vmatpush1.msra.mxu0 0.0
        %473 = vmatprep.subr.mxu0 0.0
        %474 = vmatpush1.msra.mxu0 0.0
        %475 = vmatprep.subr.mxu0 0.0
        %476 = vmatpush1.msra.mxu0 0.0
        %477 = vmatprep.subr.mxu0 0.0
        %478 = vmatpush1.msra.mxu0 0.0
        %479 = vmatprep.mubr.f32.mxu0 0.0
        %480 = vmatmul.mubr.f32.gmra.mrb[0].mxu0 %v279
        %v481 = vpop.f32.mrb[0].mxu0
        %v482 = vadd.f32 0.0, %v481
        %v483 = vpop.f32.mrb[0].mxu0
        %v484 = vadd.f32 0.0, %v483
        %485 = vdwg.mxu0
        %486 = vmatprep.subr.mxu0 %v216
        %487 = vmatpush1.msra.mxu0 %v215
        %488 = vmatprep.subr.mxu0 %v220
        %489 = vmatpush1.msra.mxu0 %v219
        %490 = vmatprep.subr.mxu0 %v224
        %491 = vmatpush1.msra.mxu0 %v223
        %492 = vmatprep.subr.mxu0 %v228
        %493 = vmatpush1.msra.mxu0 %v227
        %494 = vmatprep.subr.mxu0 %v232
        %495 = vmatpush1.msra.mxu0 %v231
        %496 = vmatprep.subr.mxu0 %v236
        %497 = vmatpush1.msra.mxu0 %v235
        %498 = vmatprep.subr.mxu0 %v240
        %499 = vmatpush1.msra.mxu0 %v239
        %500 = vmatprep.subr.mxu0 %v244
        %501 = vmatpush1.msra.mxu0 %v243
        %502 = vmatprep.subr.mxu0 %v248
        %503 = vmatpush1.msra.mxu0 %v247
        %504 = vmatprep.subr.mxu0 %v252
        %505 = vmatpush1.msra.mxu0 %v251
        %506 = vmatprep.subr.mxu0 %v256
        %507 = vmatpush1.msra.mxu0 %v255
        %508 = vmatprep.subr.mxu0 %v260
        %509 = vmatpush1.msra.mxu0 %v259
        %510 = vmatprep.subr.mxu0 %v264
        %511 = vmatpush1.msra.mxu0 %v263
        %512 = vmatprep.subr.mxu0 %v268
        %513 = vmatpush1.msra.mxu0 %v267
        %514 = vmatprep.subr.mxu0 %v272
        %515 = vmatpush1.msra.mxu0 %v271
        %516 = vmatprep.subr.mxu0 %v276
        %517 = vmatpush1.msra.mxu0 %v275
        %518 = vmatprep.subr.mxu0 0.0
        %519 = vmatpush1.msra.mxu0 0.0
        %520 = vmatprep.subr.mxu0 0.0
        %521 = vmatpush1.msra.mxu0 0.0
        %522 = vmatprep.subr.mxu0 0.0
        %523 = vmatpush1.msra.mxu0 0.0
        %524 = vmatprep.subr.mxu0 0.0
        %525 = vmatpush1.msra.mxu0 0.0
        %526 = vmatprep.subr.mxu0 0.0
        %527 = vmatpush1.msra.mxu0 0.0
        %528 = vmatprep.subr.mxu0 0.0
        %529 = vmatpush1.msra.mxu0 0.0
        %530 = vmatprep.subr.mxu0 0.0
        %531 = vmatpush1.msra.mxu0 0.0
        %532 = vmatprep.subr.mxu0 0.0
        %533 = vmatpush1.msra.mxu0 0.0
        %534 = vmatprep.subr.mxu0 0.0
        %535 = vmatpush1.msra.mxu0 0.0
        %536 = vmatprep.subr.mxu0 0.0
        %537 = vmatpush1.msra.mxu0 0.0
        %538 = vmatprep.subr.mxu0 0.0
        %539 = vmatpush1.msra.mxu0 0.0
        %540 = vmatprep.subr.mxu0 0.0
        %541 = vmatpush1.msra.mxu0 0.0
        %542 = vmatprep.subr.mxu0 0.0
        %543 = vmatpush1.msra.mxu0 0.0
        %544 = vmatprep.subr.mxu0 0.0
        %545 = vmatpush1.msra.mxu0 0.0
        %546 = vmatprep.subr.mxu0 0.0
        %547 = vmatpush1.msra.mxu0 0.0
        %548 = vmatprep.subr.mxu0 0.0
        %549 = vmatpush1.msra.mxu0 0.0
        %550 = vmatprep.mubr.f32.mxu0 0.0
        %551 = vmatmul.mubr.f32.gmra.mrb[0].mxu0 %v214
        %v552 = vpop.f32.mrb[0].mxu0
        %v553 = vadd.f32 %v411, %v552
        %v554 = vpop.f32.mrb[0].mxu0
        %v555 = vadd.f32 %v413, %v554
        %556 = vdwg.mxu0
        %557 = vmatprep.subr.mxu0 %v218
        %558 = vmatpush1.msra.mxu0 %v217
        %559 = vmatprep.subr.mxu0 %v222
        %560 = vmatpush1.msra.mxu0 %v221
        %561 = vmatprep.subr.mxu0 %v226
        %562 = vmatpush1.msra.mxu0 %v225
        %563 = vmatprep.subr.mxu0 %v230
        %564 = vmatpush1.msra.mxu0 %v229
        %565 = vmatprep.subr.mxu0 %v234
        %566 = vmatpush1.msra.mxu0 %v233
        %567 = vmatprep.subr.mxu0 %v238
        %568 = vmatpush1.msra.mxu0 %v237
        %569 = vmatprep.subr.mxu0 %v242
        %570 = vmatpush1.msra.mxu0 %v241
        %571 = vmatprep.subr.mxu0 %v246
        %572 = vmatpush1.msra.mxu0 %v245
        %573 = vmatprep.subr.mxu0 %v250
        %574 = vmatpush1.msra.mxu0 %v249
        %575 = vmatprep.subr.mxu0 %v254
        %576 = vmatpush1.msra.mxu0 %v253
        %577 = vmatprep.subr.mxu0 %v258
        %578 = vmatpush1.msra.mxu0 %v257
        %579 = vmatprep.subr.mxu0 %v262
        %580 = vmatpush1.msra.mxu0 %v261
        %581 = vmatprep.subr.mxu0 %v266
        %582 = vmatpush1.msra.mxu0 %v265
        %583 = vmatprep.subr.mxu0 %v270
        %584 = vmatpush1.msra.mxu0 %v269
        %585 = vmatprep.subr.mxu0 %v274
        %586 = vmatpush1.msra.mxu0 %v273
        %587 = vmatprep.subr.mxu0 %v278
        %588 = vmatpush1.msra.mxu0 %v277
        %589 = vmatprep.subr.mxu0 0.0
        %590 = vmatpush1.msra.mxu0 0.0
        %591 = vmatprep.subr.mxu0 0.0
        %592 = vmatpush1.msra.mxu0 0.0
        %593 = vmatprep.subr.mxu0 0.0
        %594 = vmatpush1.msra.mxu0 0.0
        %595 = vmatprep.subr.mxu0 0.0
        %596 = vmatpush1.msra.mxu0 0.0
        %597 = vmatprep.subr.mxu0 0.0
        %598 = vmatpush1.msra.mxu0 0.0
        %599 = vmatprep.subr.mxu0 0.0
        %600 = vmatpush1.msra.mxu0 0.0
        %601 = vmatprep.subr.mxu0 0.0
        %602 = vmatpush1.msra.mxu0 0.0
        %603 = vmatprep.subr.mxu0 0.0
        %604 = vmatpush1.msra.mxu0 0.0
        %605 = vmatprep.subr.mxu0 0.0
        %606 = vmatpush1.msra.mxu0 0.0
        %607 = vmatprep.subr.mxu0 0.0
        %608 = vmatpush1.msra.mxu0 0.0
        %609 = vmatprep.subr.mxu0 0.0
        %610 = vmatpush1.msra.mxu0 0.0
        %611 = vmatprep.subr.mxu0 0.0
        %612 = vmatpush1.msra.mxu0 0.0
        %613 = vmatprep.subr.mxu0 0.0
        %614 = vmatpush1.msra.mxu0 0.0
        %615 = vmatprep.subr.mxu0 0.0
        %616 = vmatpush1.msra.mxu0 0.0
        %617 = vmatprep.subr.mxu0 0.0
        %618 = vmatpush1.msra.mxu0 0.0
        %619 = vmatprep.subr.mxu0 0.0
        %620 = vmatpush1.msra.mxu0 0.0
        %621 = vmatprep.mubr.f32.mxu0 0.0
        %622 = vmatmul.mubr.f32.gmra.mrb[0].mxu0 %v214
        %v623 = vpop.f32.mrb[0].mxu0
        %v624 = vadd.f32 %v482, %v623
        %v625 = vpop.f32.mrb[0].mxu0
        %v626 = vadd.f32 %v484, %v625
        %627 = vdwg.mxu0
        %v628 = vld [vmem:[%s3] sm:$0xf]
        %v630 = vlaneseq
        %v631 = vshrl.u32 %v630, 7
        %v632 = vsub.s32 0, %v631
        %v633 = vrot.slane %v628, %v632
        %v634 = vlaneseq
        %v635 = vshrl.u32 %v634, 7
        %v636 = vsub.s32 1, %v635
        %v637 = vrot.slane %v628, %v636
        %v638 = vlaneseq
        %v639 = vshrl.u32 %v638, 7
        %v640 = vsub.s32 2, %v639
        %v641 = vrot.slane %v628, %v640
        %v642 = vlaneseq
        %v643 = vshrl.u32 %v642, 7
        %v644 = vsub.s32 3, %v643
        %v645 = vrot.slane %v628, %v644
        %v650 = vadd.f32 %v553, %v633
        %v651 = vadd.f32 %v555, %v637
        %v652 = vadd.f32 %v624, %v641
        %v653 = vadd.f32 %v626, %v645
        %v654 = vsub.f32 0.0, %v650
        %v655 = vmul.f32 %v654, 1.442695
        %v656 = vpow.pop %v655
        %v657 = vadd.f32 %v656, 1.0
        %v658 = vrcp.pop %v657
        %v659 = vmul.f32 1.0, %v658
        %v660 = vsub.f32 0.0, %v651
        %v661 = vmul.f32 %v660, 1.442695
        %v662 = vpow.pop %v661
        %v663 = vadd.f32 %v662, 1.0
        %v664 = vrcp.pop %v663
        %v665 = vmul.f32 1.0, %v664
        %v666 = vtanh.pop %v652
        %v667 = vsub.f32 0.0, %v653
        %v668 = vmul.f32 %v667, 1.442695
        %v669 = vpow.pop %v668
        %v670 = vadd.f32 %v669, 1.0
        %v671 = vrcp.pop %v670
        %v672 = vmul.f32 1.0, %v671
        %v673 = vld [vmem:[#allocation3] sm:$0xff]
        %v674 = vmul.f32 %v665, %v673
        %v675 = vmul.f32 %v659, %v666
        %v676 = vadd.f32 %v674, %v675
        %v677 = vtanh.pop %v676
        %v678 = vmul.f32 %v672, %v677
        %679 = vst [vmem:[#allocation3] sm:$0xff] %v676
        %680 = vst [vmem:[#allocation2] sm:$0xff] %v678
        %681 = vst [vmem:[%s207] sm:$0xff] %v678
        %p682 = scmp.lt.s32.totalorder %s16, 7
        %s683 = scalar_select %p682, %s16, 7
        %s684 = smul.addr %s683, 8
        %s685 = scalar_lea.vmem %s4, %s684
        // Predicated region
        $region45: #{rlu_forward.5} parent=35 // pred_check
          %p686 = pneg %p123
        $region46: #{rlu_forward.5} parent=35 // pred_check_branch
          %688 = sbr.rel (%p686) target = $region48
        $region47: #{rlu_forward.5} parent=35 // pred_region
          _
        $region48: #{rlu_forward.5} parent=35 // pred_fallthru
          _
      $region36: #{rlu_forward.5} parent=5 // pred_fallthru
        _
      %p689 = scmp.le.s32.totalorder 2, %s11
      // Predicated region
      $region49: #{rlu_forward.5} parent=5 // pred_check
        %p690 = pneg %p689
      $region50: #{rlu_forward.5} parent=5 // pred_check_branch
        %692 = sbr.rel (%p690) target = $region52
      $region51: #{rlu_forward.5} parent=5 // pred_region
        %s693 = ssub.s32 %s11, 2
        // Predicated region
        $region53: #{rlu_forward.5} parent=51 // pred_check
          %p694 = pneg %p129
        $region54: #{rlu_forward.5} parent=51 // pred_check_branch
          %696 = sbr.rel (%p694) target = $region56
        $region55: #{rlu_forward.5} parent=51 // pred_region
          %p697 = scmp.lt.s32.totalorder %s17, 7
          %s698 = scalar_select %p697, %s17, 7
          %s699 = smul.addr %s698, 8
          %s700 = scalar_lea.vmem %s4, %s699
        $region56: #{rlu_forward.5} parent=51 // pred_fallthru
          _
      $region52: #{rlu_forward.5} parent=5 // pred_fallthru
        _
    $region6: #{rlu_forward.5} parent=1 // loop_footer
      %s15 = sadd.s32 1, %s11
    $region7: #{rlu_forward.5} parent=1 // loop_footer_branch
      %10 = sbr.rel target = $region3
    $region8: #{rlu_forward.5} parent=1 // loop_exit
      _
    %701 = vsyncpa [#allocation5], 1
    %s702 = scalar_lea.sflag [#allocation5], 1
    %703 = vsyncpa %s702, 1

// kernel: rlu_forward.6
$region0: #{rlu_forward.6}
  #allocation0 [shape = 'u32[]', space=smem, size = 0x4, offset = 0x4, fixed_abs, tag = 'smem constant byte address 0x4 - core index']
  #allocation1 [shape = 'u32[144,128]{1,0:T(1,128)}', space=vmem, size = 0x12000, scoped, tag = 'internal scratch']
  #allocation2 [shape = 'f32[8,128]{1,0:T(8,128)}', space=vmem, size = 0x1000, scoped, tag = 'scratch operand']
  #allocation3 [shape = 'f32[8,128]{1,0:T(8,128)}', space=vmem, size = 0x1000, scoped, tag = 'scratch operand']
  %s0 = inlined_call_operand.vmem [shape: f32[8,8,128], index: 0, kind: input, shape index: {}]
  %s1 = inlined_call_operand.vmem [shape: f32[128,512], index: 1, kind: input, shape index: {}]
  %s2 = inlined_call_operand.vmem [shape: f32[128,512], index: 2, kind: input, shape index: {}]
  %s3 = inlined_call_operand.vmem [shape: f32[1,512], index: 3, kind: input, shape index: {}]
  %s4 = inlined_call_operand.vmem [shape: f32[8,8,128], index: 4, kind: output, shape index: {}]
  %s5 = sld [smem:[#allocation0]]
  $region53: #{rlu_forward.6} parent=0
    _
  %s7 = ssub.s32 1, %s5
  %s8 = scalar_select 0, %s7, %s5
  loop: start=0, step=1, limit=10
  $region2: #{rlu_forward.6} parent=0 // loop_pre_header
    _
  $region3: #{rlu_forward.6} parent=0 // loop_header
    %s10 = sphi 0, %s14
    %p11 = scmp.ge.s32.totalorder %s10, 10
    %s20 = sphi 0, %s22
    %s23 = sphi 0, %s20
    %s24 = sphi 0, %s23
    %s40 = sphi 0, %s24
    %s44 = sphi 0, %s44
    %s46 = sphi 0, %s44
    %s47 = sphi 0, %s46
    %s61 = sphi 0, %s47
    %s65 = sphi 0, %s65
    %s67 = sphi 0, %s65
    %s68 = sphi 0, %s67
    %s82 = sphi 0, %s68
    %s86 = sphi 0, %s86
    %s88 = sphi 0, %s86
    %s89 = sphi 0, %s88
    %s103 = sphi 0, %s89
    %s109 = sphi 0, %s111
    %s112 = sphi 0, %s109
    %s113 = sphi 0, %s112
    %s129 = sphi 0, %s113
  $region4: #{rlu_forward.6} parent=0 // loop_header_branch
    %13 = sbr.rel (%p11) target = $region8
  $region5: #{rlu_forward.6} parent=0 // loop_body
    %s15 = ssub.s32 %s10, 1
    %s16 = ssub.s32 %s10, 2
    %s17 = sadd.s32 %s10, 1
    %s18 = ssub.s32 %s10, %s17
    %p19 = scmp.eq.s32.totalorder %s18, 0
    %s21 = sadd.s32 %s20, 1
    %s22 = scalar_select %p19, %s20, %s21
    %p25 = pneg %p19
    %p26 = scmp.eq.s32.totalorder %s10, 7
    %p27 = por %p25, %p26
    %p28 = scmp.ne.s32.totalorder %s20, %s23
    %p29 = scmp.eq.s32.totalorder %s10, 0
    %p30 = por %p28, %p29
    %p31 = scmp.ne.s32.totalorder %s20, %s23
    %p32 = scmp.eq.s32.totalorder %s15, 7
    %p33 = por %p31, %p32
    %p34 = scmp.ne.s32.totalorder %s23, %s24
    %p35 = scmp.eq.s32.totalorder %s15, 0
    %p36 = por %p34, %p35
    %p37 = scmp.ne.s32.totalorder %s23, %s24
    %p38 = scmp.eq.s32.totalorder %s16, 7
    %p39 = por %p37, %p38
    %p41 = scmp.ne.s32.totalorder %s24, %s40
    %p42 = scmp.eq.s32.totalorder %s16, 0
    %p43 = por %p41, %p42
    %s45 = sadd.s32 %s44, 1
    %p48 = scmp.eq.s32.totalorder %s10, 7
    %p49 = scmp.ne.s32.totalorder %s44, %s46
    %p50 = scmp.eq.s32.totalorder %s10, 0
    %p51 = por %p49, %p50
    %p52 = scmp.ne.s32.totalorder %s44, %s46
    %p53 = scmp.eq.s32.totalorder %s15, 7
    %p54 = por %p52, %p53
    %p55 = scmp.ne.s32.totalorder %s46, %s47
    %p56 = scmp.eq.s32.totalorder %s15, 0
    %p57 = por %p55, %p56
    %p58 = scmp.ne.s32.totalorder %s46, %s47
    %p59 = scmp.eq.s32.totalorder %s16, 7
    %p60 = por %p58, %p59
    %p62 = scmp.ne.s32.totalorder %s47, %s61
    %p63 = scmp.eq.s32.totalorder %s16, 0
    %p64 = por %p62, %p63
    %s66 = sadd.s32 %s65, 1
    %p69 = scmp.eq.s32.totalorder %s10, 7
    %p70 = scmp.ne.s32.totalorder %s65, %s67
    %p71 = scmp.eq.s32.totalorder %s10, 0
    %p72 = por %p70, %p71
    %p73 = scmp.ne.s32.totalorder %s65, %s67
    %p74 = scmp.eq.s32.totalorder %s15, 7
    %p75 = por %p73, %p74
    %p76 = scmp.ne.s32.totalorder %s67, %s68
    %p77 = scmp.eq.s32.totalorder %s15, 0
    %p78 = por %p76, %p77
    %p79 = scmp.ne.s32.totalorder %s67, %s68
    %p80 = scmp.eq.s32.totalorder %s16, 7
    %p81 = por %p79, %p80
    %p83 = scmp.ne.s32.totalorder %s68, %s82
    %p84 = scmp.eq.s32.totalorder %s16, 0
    %p85 = por %p83, %p84
    %s87 = sadd.s32 %s86, 1
    %p90 = scmp.eq.s32.totalorder %s10, 7
    %p91 = scmp.ne.s32.totalorder %s86, %s88
    %p92 = scmp.eq.s32.totalorder %s10, 0
    %p93 = por %p91, %p92
    %p94 = scmp.ne.s32.totalorder %s86, %s88
    %p95 = scmp.eq.s32.totalorder %s15, 7
    %p96 = por %p94, %p95
    %p97 = scmp.ne.s32.totalorder %s88, %s89
    %p98 = scmp.eq.s32.totalorder %s15, 0
    %p99 = por %p97, %p98
    %p100 = scmp.ne.s32.totalorder %s88, %s89
    %p101 = scmp.eq.s32.totalorder %s16, 7
    %p102 = por %p100, %p101
    %p104 = scmp.ne.s32.totalorder %s89, %s103
    %p105 = scmp.eq.s32.totalorder %s16, 0
    %p106 = por %p104, %p105
    %s107 = ssub.s32 %s10, %s17
    %p108 = scmp.eq.s32.totalorder %s107, 0
    %s110 = sadd.s32 %s109, 1
    %s111 = scalar_select %p108, %s109, %s110
    %p114 = pneg %p108
    %p115 = scmp.eq.s32.totalorder %s10, 7
    %p116 = por %p114, %p115
    %p117 = scmp.ne.s32.totalorder %s109, %s112
    %p118 = scmp.eq.s32.totalorder %s10, 0
    %p119 = por %p117, %p118
    %p120 = scmp.ne.s32.totalorder %s109, %s112
    %p121 = scmp.eq.s32.totalorder %s15, 7
    %p122 = por %p120, %p121
    %p123 = scmp.ne.s32.totalorder %s112, %s113
    %p124 = scmp.eq.s32.totalorder %s15, 0
    %p125 = por %p123, %p124
    %p126 = scmp.ne.s32.totalorder %s112, %s113
    %p127 = scmp.eq.s32.totalorder %s16, 7
    %p128 = por %p126, %p127
    %p130 = scmp.ne.s32.totalorder %s113, %s129
    %p131 = scmp.eq.s32.totalorder %s16, 0
    %p132 = por %p130, %p131
    %p133 = scmp.le.s32.totalorder 1, %s10
    %p134 = scmp.lt.s32.totalorder %s10, 9
    %p135 = pnand %p133, %p134
    %p136 = pneg %p135
    // Predicated region
    $region9: #{rlu_forward.6} parent=5 // pred_check
      _
    $region10: #{rlu_forward.6} parent=5 // pred_check_branch
      %138 = sbr.rel (%p135) target = $region12
    $region11: #{rlu_forward.6} parent=5 // pred_region
      %s139 = ssub.s32 %s10, 1
      // Predicated region
      $region13: #{rlu_forward.6} parent=11 // pred_check
        %p140 = pneg %p57
      $region14: #{rlu_forward.6} parent=11 // pred_check_branch
        %142 = sbr.rel (%p140) target = $region16
      $region15: #{rlu_forward.6} parent=11 // pred_region
        _
      $region16: #{rlu_forward.6} parent=11 // pred_fallthru
        _
      // Predicated region
      $region17: #{rlu_forward.6} parent=11 // pred_check
        %p143 = pneg %p78
      $region18: #{rlu_forward.6} parent=11 // pred_check_branch
        %145 = sbr.rel (%p143) target = $region20
      $region19: #{rlu_forward.6} parent=11 // pred_region
        _
      $region20: #{rlu_forward.6} parent=11 // pred_fallthru
        _
      // Predicated region
      $region21: #{rlu_forward.6} parent=11 // pred_check
        %p146 = pneg %p99
      $region22: #{rlu_forward.6} parent=11 // pred_check_branch
        %148 = sbr.rel (%p146) target = $region24
      $region23: #{rlu_forward.6} parent=11 // pred_region
        _
      $region24: #{rlu_forward.6} parent=11 // pred_fallthru
        _
    $region12: #{rlu_forward.6} parent=5 // pred_fallthru
      _
    %p149 = scmp.lt.s32.totalorder %s10, 8
    // Predicated region
    $region25: #{rlu_forward.6} parent=5 // pred_check
      %p150 = pneg %p149
    $region26: #{rlu_forward.6} parent=5 // pred_check_branch
      %152 = sbr.rel (%p150) target = $region28
    $region27: #{rlu_forward.6} parent=5 // pred_region
      // Predicated region
      $region29: #{rlu_forward.6} parent=27 // pred_check
        %p153 = pneg %p30
      $region30: #{rlu_forward.6} parent=27 // pred_check_branch
        %155 = sbr.rel (%p153) target = $region32
      $region31: #{rlu_forward.6} parent=27 // pred_region
        %p156 = scmp.lt.s32.totalorder %s10, 7
        %s157 = scalar_select %p156, %s10, 7
        %s158 = smul.addr %s157, 8
        %s159 = scalar_lea.vmem %s0, %s158
      $region32: #{rlu_forward.6} parent=27 // pred_fallthru
        _
    $region28: #{rlu_forward.6} parent=5 // pred_fallthru
      _
    %p160 = scmp.le.s32.totalorder 1, %s10
    %p161 = scmp.lt.s32.totalorder %s10, 9
    %p162 = pnand %p160, %p161
    %p163 = pneg %p162
    // Predicated region
    $region33: #{rlu_forward.6} parent=5 // pred_check
      _
    $region34: #{rlu_forward.6} parent=5 // pred_check_branch
      %165 = sbr.rel (%p162) target = $region36
    $region35: #{rlu_forward.6} parent=5 // pred_region
      %s166 = ssub.s32 %s10, 1
      %p167 = scmp.lt.s32.totalorder %s15, 7
      %s168 = scalar_select %p167, %s15, 7
      %s169 = smul.addr %s168, 8
      %s170 = scalar_lea.vmem %s0, %s169
      %p171 = pneg %p36
      %p172 = pneg %p33
      %p173 = pneg %p57
      %p174 = pneg %p54
      %p175 = pneg %p78
      %p176 = pneg %p75
      %p177 = pneg %p99
      %p178 = pneg %p96
      %p179 = pneg %p125
      %p180 = pneg %p122
      %p181 = scmp.lt.s32.totalorder %s15, 7
      %s182 = scalar_select %p181, %s15, 7
      %s183 = smul.addr %s182, 8
      %s184 = scalar_lea.vmem %s4, %s183
      %p185 = scmp.lt.s32.totalorder %s15, 7
      %s186 = scalar_select %p185, %s15, 7
      %s187 = smul.addr %s186, 8
      %s188 = scalar_lea.vmem %s0, %s187
      %p189 = scmp.lt.s32.totalorder %s15, 7
      %s190 = scalar_select %p189, %s15, 7
      %s191 = smul.addr %s190, 8
      %s192 = scalar_lea.vmem %s4, %s191
      %p193 = scmp.eq.s32.totalorder %s15, 0
      // Predicated region
      $region37: #{rlu_forward.6} parent=35 // pred_check
        %p194 = pneg %p193
      $region38: #{rlu_forward.6} parent=35 // pred_check_branch
        %196 = sbr.rel (%p194) target = $region40
      $region39: #{rlu_forward.6} parent=35 // pred_region
        %197 = vst [vmem:[#allocation2] sm:$0xff] 0.0
        %198 = vst [vmem:[#allocation3] sm:$0xff] 0.0
      $region40: #{rlu_forward.6} parent=35 // pred_fallthru
        _
      %v199 = vld [vmem:[%s188] sm:$0xff]
      %v200 = vld [vmem:[%s1] sm:$0xff]
      %v201 = vld [vmem:[%s1 + $0x8] sm:$0xff]
      %v202 = vld [vmem:[%s1 + $0x10] sm:$0xff]
      %v203 = vld [vmem:[%s1 + $0x18] sm:$0xff]
      %v204 = vld [vmem:[%s1 + $0x20] sm:$0xff]
      %v205 = vld [vmem:[%s1 + $0x28] sm:$0xff]
      %v206 = vld [vmem:[%s1 + $0x30] sm:$0xff]
      %v207 = vld [vmem:[%s1 + $0x38] sm:$0xff]
      %v208 = vld [vmem:[%s1 + $0x40] sm:$0xff]
      %v209 = vld [vmem:[%s1 + $0x48] sm:$0xff]
      %v210 = vld [vmem:[%s1 + $0x50] sm:$0xff]
      %v211 = vld [vmem:[%s1 + $0x58] sm:$0xff]
      %v212 = vld [vmem:[%s1 + $0x60] sm:$0xff]
      %v213 = vld [vmem:[%s1 + $0x68] sm:$0xff]
      %v214 = vld [vmem:[%s1 + $0x70] sm:$0xff]
      %v215 = vld [vmem:[%s1 + $0x78] sm:$0xff]
      %v216 = vld [vmem:[%s1 + $0x80] sm:$0xff]
      %v217 = vld [vmem:[%s1 + $0x88] sm:$0xff]
      %v218 = vld [vmem:[%s1 + $0x90] sm:$0xff]
      %v219 = vld [vmem:[%s1 + $0x98] sm:$0xff]
      %v220 = vld [vmem:[%s1 + $0xa0] sm:$0xff]
      %v221 = vld [vmem:[%s1 + $0xa8] sm:$0xff]
      %v222 = vld [vmem:[%s1 + $0xb0] sm:$0xff]
      %v223 = vld [vmem:[%s1 + $0xb8] sm:$0xff]
      %v224 = vld [vmem:[%s1 + $0xc0] sm:$0xff]
      %v225 = vld [vmem:[%s1 + $0xc8] sm:$0xff]
      %v226 = vld [vmem:[%s1 + $0xd0] sm:$0xff]
      %v227 = vld [vmem:[%s1 + $0xd8] sm:$0xff]
      %v228 = vld [vmem:[%s1 + $0xe0] sm:$0xff]
      %v229 = vld [vmem:[%s1 + $0xe8] sm:$0xff]
      %v230 = vld [vmem:[%s1 + $0xf0] sm:$0xff]
      %v231 = vld [vmem:[%s1 + $0xf8] sm:$0xff]
      %v232 = vld [vmem:[%s1 + $0x100] sm:$0xff]
      %v233 = vld [vmem:[%s1 + $0x108] sm:$0xff]
      %v234 = vld [vmem:[%s1 + $0x110] sm:$0xff]
      %v235 = vld [vmem:[%s1 + $0x118] sm:$0xff]
      %v236 = vld [vmem:[%s1 + $0x120] sm:$0xff]
      %v237 = vld [vmem:[%s1 + $0x128] sm:$0xff]
      %v238 = vld [vmem:[%s1 + $0x130] sm:$0xff]
      %v239 = vld [vmem:[%s1 + $0x138] sm:$0xff]
      %v240 = vld [vmem:[%s1 + $0x140] sm:$0xff]
      %v241 = vld [vmem:[%s1 + $0x148] sm:$0xff]
      %v242 = vld [vmem:[%s1 + $0x150] sm:$0xff]
      %v243 = vld [vmem:[%s1 + $0x158] sm:$0xff]
      %v244 = vld [vmem:[%s1 + $0x160] sm:$0xff]
      %v245 = vld [vmem:[%s1 + $0x168] sm:$0xff]
      %v246 = vld [vmem:[%s1 + $0x170] sm:$0xff]
      %v247 = vld [vmem:[%s1 + $0x178] sm:$0xff]
      %v248 = vld [vmem:[%s1 + $0x180] sm:$0xff]
      %v249 = vld [vmem:[%s1 + $0x188] sm:$0xff]
      %v250 = vld [vmem:[%s1 + $0x190] sm:$0xff]
      %v251 = vld [vmem:[%s1 + $0x198] sm:$0xff]
      %v252 = vld [vmem:[%s1 + $0x1a0] sm:$0xff]
      %v253 = vld [vmem:[%s1 + $0x1a8] sm:$0xff]
      %v254 = vld [vmem:[%s1 + $0x1b0] sm:$0xff]
      %v255 = vld [vmem:[%s1 + $0x1b8] sm:$0xff]
      %v256 = vld [vmem:[%s1 + $0x1c0] sm:$0xff]
      %v257 = vld [vmem:[%s1 + $0x1c8] sm:$0xff]
      %v258 = vld [vmem:[%s1 + $0x1d0] sm:$0xff]
      %v259 = vld [vmem:[%s1 + $0x1d8] sm:$0xff]
      %v260 = vld [vmem:[%s1 + $0x1e0] sm:$0xff]
      %v261 = vld [vmem:[%s1 + $0x1e8] sm:$0xff]
      %v262 = vld [vmem:[%s1 + $0x1f0] sm:$0xff]
      %v263 = vld [vmem:[%s1 + $0x1f8] sm:$0xff]
      %v264 = vld [vmem:[#allocation2] sm:$0xff]
      %v265 = vld [vmem:[%s2] sm:$0xff]
      %v266 = vld [vmem:[%s2 + $0x8] sm:$0xff]
      %v267 = vld [vmem:[%s2 + $0x10] sm:$0xff]
      %v268 = vld [vmem:[%s2 + $0x18] sm:$0xff]
      %v269 = vld [vmem:[%s2 + $0x20] sm:$0xff]
      %v270 = vld [vmem:[%s2 + $0x28] sm:$0xff]
      %v271 = vld [vmem:[%s2 + $0x30] sm:$0xff]
      %v272 = vld [vmem:[%s2 + $0x38] sm:$0xff]
      %v273 = vld [vmem:[%s2 + $0x40] sm:$0xff]
      %v274 = vld [vmem:[%s2 + $0x48] sm:$0xff]
      %v275 = vld [vmem:[%s2 + $0x50] sm:$0xff]
      %v276 = vld [vmem:[%s2 + $0x58] sm:$0xff]
      %v277 = vld [vmem:[%s2 + $0x60] sm:$0xff]
      %v278 = vld [vmem:[%s2 + $0x68] sm:$0xff]
      %v279 = vld [vmem:[%s2 + $0x70] sm:$0xff]
      %v280 = vld [vmem:[%s2 + $0x78] sm:$0xff]
      %v281 = vld [vmem:[%s2 + $0x80] sm:$0xff]
      %v282 = vld [vmem:[%s2 + $0x88] sm:$0xff]
      %v283 = vld [vmem:[%s2 + $0x90] sm:$0xff]
      %v284 = vld [vmem:[%s2 + $0x98] sm:$0xff]
      %v285 = vld [vmem:[%s2 + $0xa0] sm:$0xff]
      %v286 = vld [vmem:[%s2 + $0xa8] sm:$0xff]
      %v287 = vld [vmem:[%s2 + $0xb0] sm:$0xff]
      %v288 = vld [vmem:[%s2 + $0xb8] sm:$0xff]
      %v289 = vld [vmem:[%s2 + $0xc0] sm:$0xff]
      %v290 = vld [vmem:[%s2 + $0xc8] sm:$0xff]
      %v291 = vld [vmem:[%s2 + $0xd0] sm:$0xff]
      %v292 = vld [vmem:[%s2 + $0xd8] sm:$0xff]
      %v293 = vld [vmem:[%s2 + $0xe0] sm:$0xff]
      %v294 = vld [vmem:[%s2 + $0xe8] sm:$0xff]
      %v295 = vld [vmem:[%s2 + $0xf0] sm:$0xff]
      %v296 = vld [vmem:[%s2 + $0xf8] sm:$0xff]
      %v297 = vld [vmem:[%s2 + $0x100] sm:$0xff]
      %v298 = vld [vmem:[%s2 + $0x108] sm:$0xff]
      %v299 = vld [vmem:[%s2 + $0x110] sm:$0xff]
      %v300 = vld [vmem:[%s2 + $0x118] sm:$0xff]
      %v301 = vld [vmem:[%s2 + $0x120] sm:$0xff]
      %v302 = vld [vmem:[%s2 + $0x128] sm:$0xff]
      %v303 = vld [vmem:[%s2 + $0x130] sm:$0xff]
      %v304 = vld [vmem:[%s2 + $0x138] sm:$0xff]
      %v305 = vld [vmem:[%s2 + $0x140] sm:$0xff]
      %v306 = vld [vmem:[%s2 + $0x148] sm:$0xff]
      %v307 = vld [vmem:[%s2 + $0x150] sm:$0xff]
      %v308 = vld [vmem:[%s2 + $0x158] sm:$0xff]
      %v309 = vld [vmem:[%s2 + $0x160] sm:$0xff]
      %v310 = vld [vmem:[%s2 + $0x168] sm:$0xff]
      %v311 = vld [vmem:[%s2 + $0x170] sm:$0xff]
      %v312 = vld [vmem:[%s2 + $0x178] sm:$0xff]
      %v313 = vld [vmem:[%s2 + $0x180] sm:$0xff]
      %v314 = vld [vmem:[%s2 + $0x188] sm:$0xff]
      %v315 = vld [vmem:[%s2 + $0x190] sm:$0xff]
      %v316 = vld [vmem:[%s2 + $0x198] sm:$0xff]
      %v317 = vld [vmem:[%s2 + $0x1a0] sm:$0xff]
      %v318 = vld [vmem:[%s2 + $0x1a8] sm:$0xff]
      %v319 = vld [vmem:[%s2 + $0x1b0] sm:$0xff]
      %v320 = vld [vmem:[%s2 + $0x1b8] sm:$0xff]
      %v321 = vld [vmem:[%s2 + $0x1c0] sm:$0xff]
      %v322 = vld [vmem:[%s2 + $0x1c8] sm:$0xff]
      %v323 = vld [vmem:[%s2 + $0x1d0] sm:$0xff]
      %v324 = vld [vmem:[%s2 + $0x1d8] sm:$0xff]
      %v325 = vld [vmem:[%s2 + $0x1e0] sm:$0xff]
      %v326 = vld [vmem:[%s2 + $0x1e8] sm:$0xff]
      %v327 = vld [vmem:[%s2 + $0x1f0] sm:$0xff]
      %v328 = vld [vmem:[%s2 + $0x1f8] sm:$0xff]
      %329 = vmatprep.subr.mxu0 %v266
      %330 = vmatpush1.msra.mxu0 %v265
      %331 = vmatprep.subr.mxu0 %v270
      %332 = vmatpush1.msra.mxu0 %v269
      %333 = vmatprep.subr.mxu0 %v274
      %334 = vmatpush1.msra.mxu0 %v273
      %335 = vmatprep.subr.mxu0 %v278
      %336 = vmatpush1.msra.mxu0 %v277
      %337 = vmatprep.subr.mxu0 %v282
      %338 = vmatpush1.msra.mxu0 %v281
      %339 = vmatprep.subr.mxu0 %v286
      %340 = vmatpush1.msra.mxu0 %v285
      %341 = vmatprep.subr.mxu0 %v290
      %342 = vmatpush1.msra.mxu0 %v289
      %343 = vmatprep.subr.mxu0 %v294
      %344 = vmatpush1.msra.mxu0 %v293
      %345 = vmatprep.subr.mxu0 %v298
      %346 = vmatpush1.msra.mxu0 %v297
      %347 = vmatprep.subr.mxu0 %v302
      %348 = vmatpush1.msra.mxu0 %v301
      %349 = vmatprep.subr.mxu0 %v306
      %350 = vmatpush1.msra.mxu0 %v305
      %351 = vmatprep.subr.mxu0 %v310
      %352 = vmatpush1.msra.mxu0 %v309
      %353 = vmatprep.subr.mxu0 %v314
      %354 = vmatpush1.msra.mxu0 %v313
      %355 = vmatprep.subr.mxu0 %v318
      %356 = vmatpush1.msra.mxu0 %v317
      %357 = vmatprep.subr.mxu0 %v322
      %358 = vmatpush1.msra.mxu0 %v321
      %359 = vmatprep.subr.mxu0 %v326
      %360 = vmatpush1.msra.mxu0 %v325
      %361 = vmatprep.subr.mxu0 0.0
      %362 = vmatpush1.msra.mxu0 0.0
      %363 = vmatprep.subr.mxu0 0.0
      %364 = vmatpush1.msra.mxu0 0.0
      %365 = vmatprep.subr.mxu0 0.0
      %366 = vmatpush1.msra.mxu0 0.0
      %367 = vmatprep.subr.mxu0 0.0
      %368 = vmatpush1.msra.mxu0 0.0
      %369 = vmatprep.subr.mxu0 0.0
      %370 = vmatpush1.msra.mxu0 0.0
      %371 = vmatprep.subr.mxu0 0.0
      %372 = vmatpush1.msra.mxu0 0.0
      %373 = vmatprep.subr.mxu0 0.0
      %374 = vmatpush1.msra.mxu0 0.0
      %375 = vmatprep.subr.mxu0 0.0
      %376 = vmatpush1.msra.mxu0 0.0
      %377 = vmatprep.subr.mxu0 0.0
      %378 = vmatpush1.msra.mxu0 0.0
      %379 = vmatprep.subr.mxu0 0.0
      %380 = vmatpush1.msra.mxu0 0.0
      %381 = vmatprep.subr.mxu0 0.0
      %382 = vmatpush1.msra.mxu0 0.0
      %383 = vmatprep.subr.mxu0 0.0
      %384 = vmatpush1.msra.mxu0 0.0
      %385 = vmatprep.subr.mxu0 0.0
      %386 = vmatpush1.msra.mxu0 0.0
      %387 = vmatprep.subr.mxu0 0.0
      %388 = vmatpush1.msra.mxu0 0.0
      %389 = vmatprep.subr.mxu0 0.0
      %390 = vmatpush1.msra.mxu0 0.0
      %391 = vmatprep.subr.mxu0 0.0
      %392 = vmatpush1.msra.mxu0 0.0
      %393 = vmatprep.mubr.f32.mxu0 0.0
      %394 = vmatmul.mubr.f32.gmra.mrb[0].mxu0 %v264
      %v395 = vpop.f32.mrb[0].mxu0
      %v396 = vadd.f32 0.0, %v395
      %v397 = vpop.f32.mrb[0].mxu0
      %v398 = vadd.f32 0.0, %v397
      %399 = vdwg.mxu0
      %400 = vmatprep.subr.mxu0 %v268
      %401 = vmatpush1.msra.mxu0 %v267
      %402 = vmatprep.subr.mxu0 %v272
      %403 = vmatpush1.msra.mxu0 %v271
      %404 = vmatprep.subr.mxu0 %v276
      %405 = vmatpush1.msra.mxu0 %v275
      %406 = vmatprep.subr.mxu0 %v280
      %407 = vmatpush1.msra.mxu0 %v279
      %408 = vmatprep.subr.mxu0 %v284
      %409 = vmatpush1.msra.mxu0 %v283
      %410 = vmatprep.subr.mxu0 %v288
      %411 = vmatpush1.msra.mxu0 %v287
      %412 = vmatprep.subr.mxu0 %v292
      %413 = vmatpush1.msra.mxu0 %v291
      %414 = vmatprep.subr.mxu0 %v296
      %415 = vmatpush1.msra.mxu0 %v295
      %416 = vmatprep.subr.mxu0 %v300
      %417 = vmatpush1.msra.mxu0 %v299
      %418 = vmatprep.subr.mxu0 %v304
      %419 = vmatpush1.msra.mxu0 %v303
      %420 = vmatprep.subr.mxu0 %v308
      %421 = vmatpush1.msra.mxu0 %v307
      %422 = vmatprep.subr.mxu0 %v312
      %423 = vmatpush1.msra.mxu0 %v311
      %424 = vmatprep.subr.mxu0 %v316
      %425 = vmatpush1.msra.mxu0 %v315
      %426 = vmatprep.subr.mxu0 %v320
      %427 = vmatpush1.msra.mxu0 %v319
      %428 = vmatprep.subr.mxu0 %v324
      %429 = vmatpush1.msra.mxu0 %v323
      %430 = vmatprep.subr.mxu0 %v328
      %431 = vmatpush1.msra.mxu0 %v327
      %432 = vmatprep.subr.mxu0 0.0
      %433 = vmatpush1.msra.mxu0 0.0
      %434 = vmatprep.subr.mxu0 0.0
      %435 = vmatpush1.msra.mxu0 0.0
      %436 = vmatprep.subr.mxu0 0.0
      %437 = vmatpush1.msra.mxu0 0.0
      %438 = vmatprep.subr.mxu0 0.0
      %439 = vmatpush1.msra.mxu0 0.0
      %440 = vmatprep.subr.mxu0 0.0
      %441 = vmatpush1.msra.mxu0 0.0
      %442 = vmatprep.subr.mxu0 0.0
      %443 = vmatpush1.msra.mxu0 0.0
      %444 = vmatprep.subr.mxu0 0.0
      %445 = vmatpush1.msra.mxu0 0.0
      %446 = vmatprep.subr.mxu0 0.0
      %447 = vmatpush1.msra.mxu0 0.0
      %448 = vmatprep.subr.mxu0 0.0
      %449 = vmatpush1.msra.mxu0 0.0
      %450 = vmatprep.subr.mxu0 0.0
      %451 = vmatpush1.msra.mxu0 0.0
      %452 = vmatprep.subr.mxu0 0.0
      %453 = vmatpush1.msra.mxu0 0.0
      %454 = vmatprep.subr.mxu0 0.0
      %455 = vmatpush1.msra.mxu0 0.0
      %456 = vmatprep.subr.mxu0 0.0
      %457 = vmatpush1.msra.mxu0 0.0
      %458 = vmatprep.subr.mxu0 0.0
      %459 = vmatpush1.msra.mxu0 0.0
      %460 = vmatprep.subr.mxu0 0.0
      %461 = vmatpush1.msra.mxu0 0.0
      %462 = vmatprep.subr.mxu0 0.0
      %463 = vmatpush1.msra.mxu0 0.0
      %464 = vmatprep.mubr.f32.mxu0 0.0
      %465 = vmatmul.mubr.f32.gmra.mrb[0].mxu0 %v264
      %v466 = vpop.f32.mrb[0].mxu0
      %v467 = vadd.f32 0.0, %v466
      %v468 = vpop.f32.mrb[0].mxu0
      %v469 = vadd.f32 0.0, %v468
      %470 = vdwg.mxu0
      %471 = vmatprep.subr.mxu0 %v201
      %472 = vmatpush1.msra.mxu0 %v200
      %473 = vmatprep.subr.mxu0 %v205
      %474 = vmatpush1.msra.mxu0 %v204
      %475 = vmatprep.subr.mxu0 %v209
      %476 = vmatpush1.msra.mxu0 %v208
      %477 = vmatprep.subr.mxu0 %v213
      %478 = vmatpush1.msra.mxu0 %v212
      %479 = vmatprep.subr.mxu0 %v217
      %480 = vmatpush1.msra.mxu0 %v216
      %481 = vmatprep.subr.mxu0 %v221
      %482 = vmatpush1.msra.mxu0 %v220
      %483 = vmatprep.subr.mxu0 %v225
      %484 = vmatpush1.msra.mxu0 %v224
      %485 = vmatprep.subr.mxu0 %v229
      %486 = vmatpush1.msra.mxu0 %v228
      %487 = vmatprep.subr.mxu0 %v233
      %488 = vmatpush1.msra.mxu0 %v232
      %489 = vmatprep.subr.mxu0 %v237
      %490 = vmatpush1.msra.mxu0 %v236
      %491 = vmatprep.subr.mxu0 %v241
      %492 = vmatpush1.msra.mxu0 %v240
      %493 = vmatprep.subr.mxu0 %v245
      %494 = vmatpush1.msra.mxu0 %v244
      %495 = vmatprep.subr.mxu0 %v249
      %496 = vmatpush1.msra.mxu0 %v248
      %497 = vmatprep.subr.mxu0 %v253
      %498 = vmatpush1.msra.mxu0 %v252
      %499 = vmatprep.subr.mxu0 %v257
      %500 = vmatpush1.msra.mxu0 %v256
      %501 = vmatprep.subr.mxu0 %v261
      %502 = vmatpush1.msra.mxu0 %v260
      %503 = vmatprep.subr.mxu0 0.0
      %504 = vmatpush1.msra.mxu0 0.0
      %505 = vmatprep.subr.mxu0 0.0
      %506 = vmatpush1.msra.mxu0 0.0
      %507 = vmatprep.subr.mxu0 0.0
      %508 = vmatpush1.msra.mxu0 0.0
      %509 = vmatprep.subr.mxu0 0.0
      %510 = vmatpush1.msra.mxu0 0.0
      %511 = vmatprep.subr.mxu0 0.0
      %512 = vmatpush1.msra.mxu0 0.0
      %513 = vmatprep.subr.mxu0 0.0
      %514 = vmatpush1.msra.mxu0 0.0
      %515 = vmatprep.subr.mxu0 0.0
      %516 = vmatpush1.msra.mxu0 0.0
      %517 = vmatprep.subr.mxu0 0.0
      %518 = vmatpush1.msra.mxu0 0.0
      %519 = vmatprep.subr.mxu0 0.0
      %520 = vmatpush1.msra.mxu0 0.0
      %521 = vmatprep.subr.mxu0 0.0
      %522 = vmatpush1.msra.mxu0 0.0
      %523 = vmatprep.subr.mxu0 0.0
      %524 = vmatpush1.msra.mxu0 0.0
      %525 = vmatprep.subr.mxu0 0.0
      %526 = vmatpush1.msra.mxu0 0.0
      %527 = vmatprep.subr.mxu0 0.0
      %528 = vmatpush1.msra.mxu0 0.0
      %529 = vmatprep.subr.mxu0 0.0
      %530 = vmatpush1.msra.mxu0 0.0
      %531 = vmatprep.subr.mxu0 0.0
      %532 = vmatpush1.msra.mxu0 0.0
      %533 = vmatprep.subr.mxu0 0.0
      %534 = vmatpush1.msra.mxu0 0.0
      %535 = vmatprep.mubr.f32.mxu0 0.0
      %536 = vmatmul.mubr.f32.gmra.mrb[0].mxu0 %v199
      %v537 = vpop.f32.mrb[0].mxu0
      %v538 = vadd.f32 %v396, %v537
      %v539 = vpop.f32.mrb[0].mxu0
      %v540 = vadd.f32 %v398, %v539
      %541 = vdwg.mxu0
      %542 = vmatprep.subr.mxu0 %v203
      %543 = vmatpush1.msra.mxu0 %v202
      %544 = vmatprep.subr.mxu0 %v207
      %545 = vmatpush1.msra.mxu0 %v206
      %546 = vmatprep.subr.mxu0 %v211
      %547 = vmatpush1.msra.mxu0 %v210
      %548 = vmatprep.subr.mxu0 %v215
      %549 = vmatpush1.msra.mxu0 %v214
      %550 = vmatprep.subr.mxu0 %v219
      %551 = vmatpush1.msra.mxu0 %v218
      %552 = vmatprep.subr.mxu0 %v223
      %553 = vmatpush1.msra.mxu0 %v222
      %554 = vmatprep.subr.mxu0 %v227
      %555 = vmatpush1.msra.mxu0 %v226
      %556 = vmatprep.subr.mxu0 %v231
      %557 = vmatpush1.msra.mxu0 %v230
      %558 = vmatprep.subr.mxu0 %v235
      %559 = vmatpush1.msra.mxu0 %v234
      %560 = vmatprep.subr.mxu0 %v239
      %561 = vmatpush1.msra.mxu0 %v238
      %562 = vmatprep.subr.mxu0 %v243
      %563 = vmatpush1.msra.mxu0 %v242
      %564 = vmatprep.subr.mxu0 %v247
      %565 = vmatpush1.msra.mxu0 %v246
      %566 = vmatprep.subr.mxu0 %v251
      %567 = vmatpush1.msra.mxu0 %v250
      %568 = vmatprep.subr.mxu0 %v255
      %569 = vmatpush1.msra.mxu0 %v254
      %570 = vmatprep.subr.mxu0 %v259
      %571 = vmatpush1.msra.mxu0 %v258
      %572 = vmatprep.subr.mxu0 %v263
      %573 = vmatpush1.msra.mxu0 %v262
      %574 = vmatprep.subr.mxu0 0.0
      %575 = vmatpush1.msra.mxu0 0.0
      %576 = vmatprep.subr.mxu0 0.0
      %577 = vmatpush1.msra.mxu0 0.0
      %578 = vmatprep.subr.mxu0 0.0
      %579 = vmatpush1.msra.mxu0 0.0
      %580 = vmatprep.subr.mxu0 0.0
      %581 = vmatpush1.msra.mxu0 0.0
      %582 = vmatprep.subr.mxu0 0.0
      %583 = vmatpush1.msra.mxu0 0.0
      %584 = vmatprep.subr.mxu0 0.0
      %585 = vmatpush1.msra.mxu0 0.0
      %586 = vmatprep.subr.mxu0 0.0
      %587 = vmatpush1.msra.mxu0 0.0
      %588 = vmatprep.subr.mxu0 0.0
      %589 = vmatpush1.msra.mxu0 0.0
      %590 = vmatprep.subr.mxu0 0.0
      %591 = vmatpush1.msra.mxu0 0.0
      %592 = vmatprep.subr.mxu0 0.0
      %593 = vmatpush1.msra.mxu0 0.0
      %594 = vmatprep.subr.mxu0 0.0
      %595 = vmatpush1.msra.mxu0 0.0
      %596 = vmatprep.subr.mxu0 0.0
      %597 = vmatpush1.msra.mxu0 0.0
      %598 = vmatprep.subr.mxu0 0.0
      %599 = vmatpush1.msra.mxu0 0.0
      %600 = vmatprep.subr.mxu0 0.0
      %601 = vmatpush1.msra.mxu0 0.0
      %602 = vmatprep.subr.mxu0 0.0
      %603 = vmatpush1.msra.mxu0 0.0
      %604 = vmatprep.subr.mxu0 0.0
      %605 = vmatpush1.msra.mxu0 0.0
      %606 = vmatprep.mubr.f32.mxu0 0.0
      %607 = vmatmul.mubr.f32.gmra.mrb[0].mxu0 %v199
      %v608 = vpop.f32.mrb[0].mxu0
      %v609 = vadd.f32 %v467, %v608
      %v610 = vpop.f32.mrb[0].mxu0
      %v611 = vadd.f32 %v469, %v610
      %612 = vdwg.mxu0
      %v613 = vld [vmem:[%s3] sm:$0xf]
      %v615 = vlaneseq
      %v616 = vshrl.u32 %v615, 7
      %v617 = vsub.s32 0, %v616
      %v618 = vrot.slane %v613, %v617
      %v619 = vlaneseq
      %v620 = vshrl.u32 %v619, 7
      %v621 = vsub.s32 1, %v620
      %v622 = vrot.slane %v613, %v621
      %v623 = vlaneseq
      %v624 = vshrl.u32 %v623, 7
      %v625 = vsub.s32 2, %v624
      %v626 = vrot.slane %v613, %v625
      %v627 = vlaneseq
      %v628 = vshrl.u32 %v627, 7
      %v629 = vsub.s32 3, %v628
      %v630 = vrot.slane %v613, %v629
      %v635 = vadd.f32 %v538, %v618
      %v636 = vadd.f32 %v540, %v622
      %v637 = vadd.f32 %v609, %v626
      %v638 = vadd.f32 %v611, %v630
      %v639 = vsub.f32 0.0, %v635
      %v640 = vmul.f32 %v639, 1.442695
      %v641 = vpow.pop %v640
      %v642 = vadd.f32 %v641, 1.0
      %v643 = vrcp.pop %v642
      %v644 = vmul.f32 1.0, %v643
      %v645 = vsub.f32 0.0, %v636
      %v646 = vmul.f32 %v645, 1.442695
      %v647 = vpow.pop %v646
      %v648 = vadd.f32 %v647, 1.0
      %v649 = vrcp.pop %v648
      %v650 = vmul.f32 1.0, %v649
      %v651 = vtanh.pop %v637
      %v652 = vsub.f32 0.0, %v638
      %v653 = vmul.f32 %v652, 1.442695
      %v654 = vpow.pop %v653
      %v655 = vadd.f32 %v654, 1.0
      %v656 = vrcp.pop %v655
      %v657 = vmul.f32 1.0, %v656
      %v658 = vld [vmem:[#allocation3] sm:$0xff]
      %v659 = vmul.f32 %v650, %v658
      %v660 = vmul.f32 %v644, %v651
      %v661 = vadd.f32 %v659, %v660
      %v662 = vtanh.pop %v661
      %v663 = vmul.f32 %v657, %v662
      %664 = vst [vmem:[#allocation3] sm:$0xff] %v661
      %665 = vst [vmem:[#allocation2] sm:$0xff] %v663
      %666 = vst [vmem:[%s192] sm:$0xff] %v663
      %p667 = scmp.lt.s32.totalorder %s15, 7
      %s668 = scalar_select %p667, %s15, 7
      %s669 = smul.addr %s668, 8
      %s670 = scalar_lea.vmem %s4, %s669
      // Predicated region
      $region41: #{rlu_forward.6} parent=35 // pred_check
        %p671 = pneg %p122
      $region42: #{rlu_forward.6} parent=35 // pred_check_branch
        %673 = sbr.rel (%p671) target = $region44
      $region43: #{rlu_forward.6} parent=35 // pred_region
        _
      $region44: #{rlu_forward.6} parent=35 // pred_fallthru
        _
    $region36: #{rlu_forward.6} parent=5 // pred_fallthru
      _
    %p674 = scmp.le.s32.totalorder 2, %s10
    // Predicated region
    $region45: #{rlu_forward.6} parent=5 // pred_check
      %p675 = pneg %p674
    $region46: #{rlu_forward.6} parent=5 // pred_check_branch
      %677 = sbr.rel (%p675) target = $region48
    $region47: #{rlu_forward.6} parent=5 // pred_region
      %s678 = ssub.s32 %s10, 2
      // Predicated region
      $region49: #{rlu_forward.6} parent=47 // pred_check
        %p679 = pneg %p128
      $region50: #{rlu_forward.6} parent=47 // pred_check_branch
        %681 = sbr.rel (%p679) target = $region52
      $region51: #{rlu_forward.6} parent=47 // pred_region
        %p682 = scmp.lt.s32.totalorder %s16, 7
        %s683 = scalar_select %p682, %s16, 7
        %s684 = smul.addr %s683, 8
        %s685 = scalar_lea.vmem %s4, %s684
      $region52: #{rlu_forward.6} parent=47 // pred_fallthru
        _
    $region48: #{rlu_forward.6} parent=5 // pred_fallthru
      _
  $region6: #{rlu_forward.6} parent=0 // loop_footer
    %s14 = sadd.s32 1, %s10
  $region7: #{rlu_forward.6} parent=0 // loop_footer_branch
    %9 = sbr.rel target = $region3
  $region8: #{rlu_forward.6} parent=0 // loop_exit
    _

// kernel: rlu_forward.7
$region0: #{rlu_forward.7}
  #allocation0 [shape = 'u32[]', space=smem, size = 0x4, offset = 0x4, fixed_abs, tag = 'smem constant byte address 0x4 - core index']
  #allocation1 [shape = 'u32[144,128]{1,0:T(1,128)}', space=vmem, size = 0x12000, scoped, tag = 'internal scratch']
  %s0 = inlined_call_operand.vmem [shape: f32[64,128], index: 0, kind: input, shape index: {}]
  %s1 = inlined_call_operand.vmem [shape: f32[128,128], index: 1, kind: input, shape index: {}]
  %s2 = inlined_call_operand.vmem [shape: f32[1,128], index: 2, kind: input, shape index: {}]
  %s3 = inlined_call_operand.vmem [shape: f32[128,128], index: 3, kind: input, shape index: {}]
  %s4 = inlined_call_operand.vmem [shape: f32[1,128], index: 4, kind: input, shape index: {}]
  %s5 = inlined_call_operand.vmem [shape: f32[64,128], index: 5, kind: output, shape index: {}]
  %s6 = sld [smem:[#allocation0]]
  $region30: #{rlu_forward.7} parent=0
    _
  %s8 = ssub.s32 1, %s6
  %s9 = scalar_select 0, %s8, %s6
  // Predicated region
  $region2: #{rlu_forward.7} parent=0 // pred_check
    _
  $region3: #{rlu_forward.7} parent=0 // pred_check_branch
    %11 = sbr.rel (0) target = $region5
  $region4: #{rlu_forward.7} parent=0 // pred_region
    _
  $region5: #{rlu_forward.7} parent=0 // pred_fallthru
    _
  // Predicated region
  $region6: #{rlu_forward.7} parent=0 // pred_check
    _
  $region7: #{rlu_forward.7} parent=0 // pred_check_branch
    %13 = sbr.rel (0) target = $region9
  $region8: #{rlu_forward.7} parent=0 // pred_region
    _
  $region9: #{rlu_forward.7} parent=0 // pred_fallthru
    _
  // Predicated region
  $region10: #{rlu_forward.7} parent=0 // pred_check
    _
  $region11: #{rlu_forward.7} parent=0 // pred_check_branch
    %15 = sbr.rel (0) target = $region13
  $region12: #{rlu_forward.7} parent=0 // pred_region
    _
  $region13: #{rlu_forward.7} parent=0 // pred_fallthru
    _
  // Predicated region
  $region14: #{rlu_forward.7} parent=0 // pred_check
    _
  $region15: #{rlu_forward.7} parent=0 // pred_check_branch
    %17 = sbr.rel (0) target = $region17
  $region16: #{rlu_forward.7} parent=0 // pred_region
    _
  $region17: #{rlu_forward.7} parent=0 // pred_fallthru
    _
  // Predicated region
  $region18: #{rlu_forward.7} parent=0 // pred_check
    _
  $region19: #{rlu_forward.7} parent=0 // pred_check_branch
    %19 = sbr.rel (0) target = $region21
  $region20: #{rlu_forward.7} parent=0 // pred_region
    _
  $region21: #{rlu_forward.7} parent=0 // pred_fallthru
    _
  %v20 = vld [vmem:[%s0] sm:$0xff]
  %v21 = vld [vmem:[%s0 + $0x8] sm:$0xff]
  %v22 = vld [vmem:[%s0 + $0x10] sm:$0xff]
  %v23 = vld [vmem:[%s0 + $0x18] sm:$0xff]
  %v24 = vld [vmem:[%s0 + $0x20] sm:$0xff]
  %v25 = vld [vmem:[%s0 + $0x28] sm:$0xff]
  %v26 = vld [vmem:[%s0 + $0x30] sm:$0xff]
  %v27 = vld [vmem:[%s0 + $0x38] sm:$0xff]
  %v28 = vld [vmem:[%s1] sm:$0xff]
  %v29 = vld [vmem:[%s1 + $0x8] sm:$0xff]
  %v30 = vld [vmem:[%s1 + $0x10] sm:$0xff]
  %v31 = vld [vmem:[%s1 + $0x18] sm:$0xff]
  %v32 = vld [vmem:[%s1 + $0x20] sm:$0xff]
  %v33 = vld [vmem:[%s1 + $0x28] sm:$0xff]
  %v34 = vld [vmem:[%s1 + $0x30] sm:$0xff]
  %v35 = vld [vmem:[%s1 + $0x38] sm:$0xff]
  %v36 = vld [vmem:[%s1 + $0x40] sm:$0xff]
  %v37 = vld [vmem:[%s1 + $0x48] sm:$0xff]
  %v38 = vld [vmem:[%s1 + $0x50] sm:$0xff]
  %v39 = vld [vmem:[%s1 + $0x58] sm:$0xff]
  %v40 = vld [vmem:[%s1 + $0x60] sm:$0xff]
  %v41 = vld [vmem:[%s1 + $0x68] sm:$0xff]
  %v42 = vld [vmem:[%s1 + $0x70] sm:$0xff]
  %v43 = vld [vmem:[%s1 + $0x78] sm:$0xff]
  %v44 = vld [vmem:[%s2] sm:$0x1]
  %v46 = vlaneseq
  %v47 = vshrl.u32 %v46, 7
  %v48 = vsub.s32 0, %v47
  %v49 = vrot.slane %v44, %v48
  %51 = vmatprep.subr.mxu0 0.0
  %52 = vmatpush1.msra.mxu0 %v28
  %53 = vmatprep.subr.mxu0 0.0
  %54 = vmatpush1.msra.mxu0 %v29
  %55 = vmatprep.subr.mxu0 0.0
  %56 = vmatpush1.msra.mxu0 %v30
  %57 = vmatprep.subr.mxu0 0.0
  %58 = vmatpush1.msra.mxu0 %v31
  %59 = vmatprep.subr.mxu0 0.0
  %60 = vmatpush1.msra.mxu0 %v32
  %61 = vmatprep.subr.mxu0 0.0
  %62 = vmatpush1.msra.mxu0 %v33
  %63 = vmatprep.subr.mxu0 0.0
  %64 = vmatpush1.msra.mxu0 %v34
  %65 = vmatprep.subr.mxu0 0.0
  %66 = vmatpush1.msra.mxu0 %v35
  %67 = vmatprep.subr.mxu0 0.0
  %68 = vmatpush1.msra.mxu0 %v36
  %69 = vmatprep.subr.mxu0 0.0
  %70 = vmatpush1.msra.mxu0 %v37
  %71 = vmatprep.subr.mxu0 0.0
  %72 = vmatpush1.msra.mxu0 %v38
  %73 = vmatprep.subr.mxu0 0.0
  %74 = vmatpush1.msra.mxu0 %v39
  %75 = vmatprep.subr.mxu0 0.0
  %76 = vmatpush1.msra.mxu0 %v40
  %77 = vmatprep.subr.mxu0 0.0
  %78 = vmatpush1.msra.mxu0 %v41
  %79 = vmatprep.subr.mxu0 0.0
  %80 = vmatpush1.msra.mxu0 %v42
  %81 = vmatprep.subr.mxu0 0.0
  %82 = vmatpush1.msra.mxu0 %v43
  %83 = vmatprep.subr.mxu0 0.0
  %84 = vmatpush1.msra.mxu0 0.0
  %85 = vmatprep.subr.mxu0 0.0
  %86 = vmatpush1.msra.mxu0 0.0
  %87 = vmatprep.subr.mxu0 0.0
  %88 = vmatpush1.msra.mxu0 0.0
  %89 = vmatprep.subr.mxu0 0.0
  %90 = vmatpush1.msra.mxu0 0.0
  %91 = vmatprep.subr.mxu0 0.0
  %92 = vmatpush1.msra.mxu0 0.0
  %93 = vmatprep.subr.mxu0 0.0
  %94 = vmatpush1.msra.mxu0 0.0
  %95 = vmatprep.subr.mxu0 0.0
  %96 = vmatpush1.msra.mxu0 0.0
  %97 = vmatprep.subr.mxu0 0.0
  %98 = vmatpush1.msra.mxu0 0.0
  %99 = vmatprep.subr.mxu0 0.0
  %100 = vmatpush1.msra.mxu0 0.0
  %101 = vmatprep.subr.mxu0 0.0
  %102 = vmatpush1.msra.mxu0 0.0
  %103 = vmatprep.subr.mxu0 0.0
  %104 = vmatpush1.msra.mxu0 0.0
  %105 = vmatprep.subr.mxu0 0.0
  %106 = vmatpush1.msra.mxu0 0.0
  %107 = vmatprep.subr.mxu0 0.0
  %108 = vmatpush1.msra.mxu0 0.0
  %109 = vmatprep.subr.mxu0 0.0
  %110 = vmatpush1.msra.mxu0 0.0
  %111 = vmatprep.subr.mxu0 0.0
  %112 = vmatpush1.msra.mxu0 0.0
  %113 = vmatprep.subr.mxu0 0.0
  %114 = vmatpush1.msra.mxu0 0.0
  %115 = vmatprep.mubr.f32.mxu0 0.0
  %116 = vmatmul.mubr.f32.gmra.mrb[0].mxu0 %v20
  %v117 = vpop.f32.mrb[0].mxu0
  %v118 = vadd.f32 %v49, %v117
  %v119 = vpop.f32.mrb[0].mxu0
  %120 = vmatprep.mubr.f32.mxu0 0.0
  %121 = vmatmul.mubr.f32.gmra.mrb[0].mxu0 %v21
  %v122 = vpop.f32.mrb[0].mxu0
  %v123 = vadd.f32 %v49, %v122
  %v124 = vpop.f32.mrb[0].mxu0
  %125 = vmatprep.mubr.f32.mxu0 0.0
  %126 = vmatmul.mubr.f32.gmra.mrb[0].mxu0 %v22
  %v127 = vpop.f32.mrb[0].mxu0
  %v128 = vadd.f32 %v49, %v127
  %v129 = vpop.f32.mrb[0].mxu0
  %130 = vmatprep.mubr.f32.mxu0 0.0
  %131 = vmatmul.mubr.f32.gmra.mrb[0].mxu0 %v23
  %v132 = vpop.f32.mrb[0].mxu0
  %v133 = vadd.f32 %v49, %v132
  %v134 = vpop.f32.mrb[0].mxu0
  %135 = vmatprep.mubr.f32.mxu0 0.0
  %136 = vmatmul.mubr.f32.gmra.mrb[0].mxu0 %v24
  %v137 = vpop.f32.mrb[0].mxu0
  %v138 = vadd.f32 %v49, %v137
  %v139 = vpop.f32.mrb[0].mxu0
  %140 = vmatprep.mubr.f32.mxu0 0.0
  %141 = vmatmul.mubr.f32.gmra.mrb[0].mxu0 %v25
  %v142 = vpop.f32.mrb[0].mxu0
  %v143 = vadd.f32 %v49, %v142
  %v144 = vpop.f32.mrb[0].mxu0
  %145 = vmatprep.mubr.f32.mxu0 0.0
  %146 = vmatmul.mubr.f32.gmra.mrb[0].mxu0 %v26
  %v147 = vpop.f32.mrb[0].mxu0
  %v148 = vadd.f32 %v49, %v147
  %v149 = vpop.f32.mrb[0].mxu0
  %150 = vmatprep.mubr.f32.mxu0 0.0
  %151 = vmatmul.mubr.f32.gmra.mrb[0].mxu0 %v27
  %v152 = vpop.f32.mrb[0].mxu0
  %v153 = vadd.f32 %v49, %v152
  %v154 = vpop.f32.mrb[0].mxu0
  %155 = vdwg.mxu0
  %v156 = vmax.f32 %v118, 0.0
  %v157 = vmax.f32 %v123, 0.0
  %v158 = vmax.f32 %v128, 0.0
  %v159 = vmax.f32 %v133, 0.0
  %v160 = vmax.f32 %v138, 0.0
  %v161 = vmax.f32 %v143, 0.0
  %v162 = vmax.f32 %v148, 0.0
  %v163 = vmax.f32 %v153, 0.0
  %v164 = vld [vmem:[%s3] sm:$0xff]
  %v165 = vld [vmem:[%s3 + $0x8] sm:$0xff]
  %v166 = vld [vmem:[%s3 + $0x10] sm:$0xff]
  %v167 = vld [vmem:[%s3 + $0x18] sm:$0xff]
  %v168 = vld [vmem:[%s3 + $0x20] sm:$0xff]
  %v169 = vld [vmem:[%s3 + $0x28] sm:$0xff]
  %v170 = vld [vmem:[%s3 + $0x30] sm:$0xff]
  %v171 = vld [vmem:[%s3 + $0x38] sm:$0xff]
  %v172 = vld [vmem:[%s3 + $0x40] sm:$0xff]
  %v173 = vld [vmem:[%s3 + $0x48] sm:$0xff]
  %v174 = vld [vmem:[%s3 + $0x50] sm:$0xff]
  %v175 = vld [vmem:[%s3 + $0x58] sm:$0xff]
  %v176 = vld [vmem:[%s3 + $0x60] sm:$0xff]
  %v177 = vld [vmem:[%s3 + $0x68] sm:$0xff]
  %v178 = vld [vmem:[%s3 + $0x70] sm:$0xff]
  %v179 = vld [vmem:[%s3 + $0x78] sm:$0xff]
  %v180 = vld [vmem:[%s4] sm:$0x1]
  %v182 = vlaneseq
  %v183 = vshrl.u32 %v182, 7
  %v184 = vsub.s32 0, %v183
  %v185 = vrot.slane %v180, %v184
  %187 = vmatprep.subr.mxu0 0.0
  %188 = vmatpush1.msra.mxu0 %v164
  %189 = vmatprep.subr.mxu0 0.0
  %190 = vmatpush1.msra.mxu0 %v165
  %191 = vmatprep.subr.mxu0 0.0
  %192 = vmatpush1.msra.mxu0 %v166
  %193 = vmatprep.subr.mxu0 0.0
  %194 = vmatpush1.msra.mxu0 %v167
  %195 = vmatprep.subr.mxu0 0.0
  %196 = vmatpush1.msra.mxu0 %v168
  %197 = vmatprep.subr.mxu0 0.0
  %198 = vmatpush1.msra.mxu0 %v169
  %199 = vmatprep.subr.mxu0 0.0
  %200 = vmatpush1.msra.mxu0 %v170
  %201 = vmatprep.subr.mxu0 0.0
  %202 = vmatpush1.msra.mxu0 %v171
  %203 = vmatprep.subr.mxu0 0.0
  %204 = vmatpush1.msra.mxu0 %v172
  %205 = vmatprep.subr.mxu0 0.0
  %206 = vmatpush1.msra.mxu0 %v173
  %207 = vmatprep.subr.mxu0 0.0
  %208 = vmatpush1.msra.mxu0 %v174
  %209 = vmatprep.subr.mxu0 0.0
  %210 = vmatpush1.msra.mxu0 %v175
  %211 = vmatprep.subr.mxu0 0.0
  %212 = vmatpush1.msra.mxu0 %v176
  %213 = vmatprep.subr.mxu0 0.0
  %214 = vmatpush1.msra.mxu0 %v177
  %215 = vmatprep.subr.mxu0 0.0
  %216 = vmatpush1.msra.mxu0 %v178
  %217 = vmatprep.subr.mxu0 0.0
  %218 = vmatpush1.msra.mxu0 %v179
  %219 = vmatprep.subr.mxu0 0.0
  %220 = vmatpush1.msra.mxu0 0.0
  %221 = vmatprep.subr.mxu0 0.0
  %222 = vmatpush1.msra.mxu0 0.0
  %223 = vmatprep.subr.mxu0 0.0
  %224 = vmatpush1.msra.mxu0 0.0
  %225 = vmatprep.subr.mxu0 0.0
  %226 = vmatpush1.msra.mxu0 0.0
  %227 = vmatprep.subr.mxu0 0.0
  %228 = vmatpush1.msra.mxu0 0.0
  %229 = vmatprep.subr.mxu0 0.0
  %230 = vmatpush1.msra.mxu0 0.0
  %231 = vmatprep.subr.mxu0 0.0
  %232 = vmatpush1.msra.mxu0 0.0
  %233 = vmatprep.subr.mxu0 0.0
  %234 = vmatpush1.msra.mxu0 0.0
  %235 = vmatprep.subr.mxu0 0.0
  %236 = vmatpush1.msra.mxu0 0.0
  %237 = vmatprep.subr.mxu0 0.0
  %238 = vmatpush1.msra.mxu0 0.0
  %239 = vmatprep.subr.mxu0 0.0
  %240 = vmatpush1.msra.mxu0 0.0
  %241 = vmatprep.subr.mxu0 0.0
  %242 = vmatpush1.msra.mxu0 0.0
  %243 = vmatprep.subr.mxu0 0.0
  %244 = vmatpush1.msra.mxu0 0.0
  %245 = vmatprep.subr.mxu0 0.0
  %246 = vmatpush1.msra.mxu0 0.0
  %247 = vmatprep.subr.mxu0 0.0
  %248 = vmatpush1.msra.mxu0 0.0
  %249 = vmatprep.subr.mxu0 0.0
  %250 = vmatpush1.msra.mxu0 0.0
  %251 = vmatprep.mubr.f32.mxu0 0.0
  %252 = vmatmul.mubr.f32.gmra.mrb[0].mxu0 %v156
  %v253 = vpop.f32.mrb[0].mxu0
  %v254 = vadd.f32 %v185, %v253
  %v255 = vpop.f32.mrb[0].mxu0
  %256 = vmatprep.mubr.f32.mxu0 0.0
  %257 = vmatmul.mubr.f32.gmra.mrb[0].mxu0 %v157
  %v258 = vpop.f32.mrb[0].mxu0
  %v259 = vadd.f32 %v185, %v258
  %v260 = vpop.f32.mrb[0].mxu0
  %261 = vmatprep.mubr.f32.mxu0 0.0
  %262 = vmatmul.mubr.f32.gmra.mrb[0].mxu0 %v158
  %v263 = vpop.f32.mrb[0].mxu0
  %v264 = vadd.f32 %v185, %v263
  %v265 = vpop.f32.mrb[0].mxu0
  %266 = vmatprep.mubr.f32.mxu0 0.0
  %267 = vmatmul.mubr.f32.gmra.mrb[0].mxu0 %v159
  %v268 = vpop.f32.mrb[0].mxu0
  %v269 = vadd.f32 %v185, %v268
  %v270 = vpop.f32.mrb[0].mxu0
  %271 = vmatprep.mubr.f32.mxu0 0.0
  %272 = vmatmul.mubr.f32.gmra.mrb[0].mxu0 %v160
  %v273 = vpop.f32.mrb[0].mxu0
  %v274 = vadd.f32 %v185, %v273
  %v275 = vpop.f32.mrb[0].mxu0
  %276 = vmatprep.mubr.f32.mxu0 0.0
  %277 = vmatmul.mubr.f32.gmra.mrb[0].mxu0 %v161
  %v278 = vpop.f32.mrb[0].mxu0
  %v279 = vadd.f32 %v185, %v278
  %v280 = vpop.f32.mrb[0].mxu0
  %281 = vmatprep.mubr.f32.mxu0 0.0
  %282 = vmatmul.mubr.f32.gmra.mrb[0].mxu0 %v162
  %v283 = vpop.f32.mrb[0].mxu0
  %v284 = vadd.f32 %v185, %v283
  %v285 = vpop.f32.mrb[0].mxu0
  %286 = vmatprep.mubr.f32.mxu0 0.0
  %287 = vmatmul.mubr.f32.gmra.mrb[0].mxu0 %v163
  %v288 = vpop.f32.mrb[0].mxu0
  %v289 = vadd.f32 %v185, %v288
  %v290 = vpop.f32.mrb[0].mxu0
  %291 = vdwg.mxu0
  %v292 = vmax.f32 %v254, 0.0
  %v293 = vmax.f32 %v259, 0.0
  %v294 = vmax.f32 %v264, 0.0
  %v295 = vmax.f32 %v269, 0.0
  %v296 = vmax.f32 %v274, 0.0
  %v297 = vmax.f32 %v279, 0.0
  %v298 = vmax.f32 %v284, 0.0
  %v299 = vmax.f32 %v289, 0.0
  %300 = vst [vmem:[%s5] sm:$0xff] %v292
  %301 = vst [vmem:[%s5 + $0x8] sm:$0xff] %v293
  %302 = vst [vmem:[%s5 + $0x10] sm:$0xff] %v294
  %303 = vst [vmem:[%s5 + $0x18] sm:$0xff] %v295
  %304 = vst [vmem:[%s5 + $0x20] sm:$0xff] %v296
  %305 = vst [vmem:[%s5 + $0x28] sm:$0xff] %v297
  %306 = vst [vmem:[%s5 + $0x30] sm:$0xff] %v298
  %307 = vst [vmem:[%s5 + $0x38] sm:$0xff] %v299
  // Predicated region
  $region22: #{rlu_forward.7} parent=0 // pred_check
    _
  $region23: #{rlu_forward.7} parent=0 // pred_check_branch
    %309 = sbr.rel (0) target = $region25
  $region24: #{rlu_forward.7} parent=0 // pred_region
    _
  $region25: #{rlu_forward.7} parent=0 // pred_fallthru
    _
  // Predicated region
  $region26: #{rlu_forward.7} parent=0 // pred_check
    _
  $region27: #{rlu_forward.7} parent=0 // pred_check_branch
    %311 = sbr.rel (0) target = $region29
  $region28: #{rlu_forward.7} parent=0 // pred_region
    _
  $region29: #{rlu_forward.7} parent=0 // pred_fallthru
    _

</llo_original>
